<compile_context>
chip_gen: v6e
topology: v6e:2x2x1
jax: 0.10.0
libtpu: 0.0.40
codegen_flags: <defaults>
</compile_context>

<pallas_src>
import functools

import jax
import jax.numpy as jnp
from jax.experimental import pallas as pl
from jax.experimental.pallas import tpu as pltpu


# ----------------------------------------------------------------------------
# Pallas kernels
# ----------------------------------------------------------------------------
def conv_bn_relu_kernel(cols_ref, w_ref, shift_ref, out_ref):
    """(im2col matmul) + BN shift + ReLU.  bf16 inputs, f32 accumulation."""
    y = jnp.dot(cols_ref[...], w_ref[...], preferred_element_type=jnp.float32)
    y = y + shift_ref[...]                       # (1, Cout) broadcast
    out_ref[...] = jnp.maximum(y, 0.0).astype(out_ref.dtype)


def res_proj_kernel(cols_ref, w_ref, shift_ref, xs_ref, wid_ref, shid_ref,
                    out_ref):
    """conv2 matmul + BN shift + 1x1-projection matmul + BN shift + add + ReLU."""
    y = jnp.dot(cols_ref[...], w_ref[...], preferred_element_type=jnp.float32)
    y = y + shift_ref[...]
    y = y + jnp.dot(xs_ref[...], wid_ref[...], preferred_element_type=jnp.float32)
    y = y + shid_ref[...]
    out_ref[...] = jnp.maximum(y, 0.0).astype(out_ref.dtype)


def res_id_kernel(cols_ref, w_ref, shift_ref, xres_ref, out_ref):
    """conv2 matmul + BN shift + identity shortcut add + ReLU."""
    y = jnp.dot(cols_ref[...], w_ref[...], preferred_element_type=jnp.float32)
    y = y + shift_ref[...]
    y = y + xres_ref[...].astype(jnp.float32)
    out_ref[...] = jnp.maximum(y, 0.0).astype(out_ref.dtype)


# ----------------------------------------------------------------------------
# Pallas call wrappers (M-tiled grid, weights resident in VMEM)
# ----------------------------------------------------------------------------
def _tile_rows(m):
    if m >= 256:
        return 256
    return max(8, ((m + 7) // 8) * 8)


def _pad_rows(a, m_pad):
    m = a.shape[0]
    if m_pad == m:
        return a
    return jnp.pad(a, ((0, m_pad - m), (0, 0)))


def fused_conv_bn_relu(cols, w, shift, out_dtype=jnp.bfloat16):
    M, K = cols.shape
    Cout = w.shape[1]
    tm = _tile_rows(M)
    m_pad = pl.cdiv(M, tm) * tm
    cols_p = _pad_rows(cols, m_pad)
    out = pl.pallas_call(
        conv_bn_relu_kernel,
        out_shape=jax.ShapeDtypeStruct((m_pad, Cout), out_dtype),
        grid=(m_pad // tm,),
        in_specs=[
            pl.BlockSpec((tm, K), lambda i: (i, 0)),       # cols tile, pipelined
            pl.BlockSpec((K, Cout), lambda i: (0, 0)),     # weight, resident
            pl.BlockSpec((1, Cout), lambda i: (0, 0)),     # BN shift, resident
        ],
        out_specs=pl.BlockSpec((tm, Cout), lambda i: (i, 0)),
        compiler_params=pltpu.CompilerParams(
            dimension_semantics=("parallel",)),
    )(cols_p, w, shift)
    return out[:M]


def fused_res_proj(cols, w, shift, xs, w_id, shift_id, out_dtype=jnp.float32):
    M, K = cols.shape
    Cin = xs.shape[1]
    Cout = w.shape[1]
    tm = _tile_rows(M)
    m_pad = pl.cdiv(M, tm) * tm
    cols_p = _pad_rows(cols, m_pad)
    xs_p = _pad_rows(xs, m_pad)
    out = pl.pallas_call(
        res_proj_kernel,
        out_shape=jax.ShapeDtypeStruct((m_pad, Cout), out_dtype),
        grid=(m_pad // tm,),
        in_specs=[
            pl.BlockSpec((tm, K), lambda i: (i, 0)),
            pl.BlockSpec((K, Cout), lambda i: (0, 0)),
            pl.BlockSpec((1, Cout), lambda i: (0, 0)),
            pl.BlockSpec((tm, Cin), lambda i: (i, 0)),
            pl.BlockSpec((Cin, Cout), lambda i: (0, 0)),
            pl.BlockSpec((1, Cout), lambda i: (0, 0)),
        ],
        out_specs=pl.BlockSpec((tm, Cout), lambda i: (i, 0)),
        compiler_params=pltpu.CompilerParams(
            dimension_semantics=("parallel",)),
    )(cols_p, w, shift, xs_p, w_id, shift_id)
    return out[:M]


def fused_res_id(cols, w, shift, x_res, out_dtype=jnp.float32):
    M, K = cols.shape
    Cres = x_res.shape[1]
    Cout = w.shape[1]
    tm = _tile_rows(M)
    m_pad = pl.cdiv(M, tm) * tm
    cols_p = _pad_rows(cols, m_pad)
    xres_p = _pad_rows(x_res, m_pad)
    out = pl.pallas_call(
        res_id_kernel,
        out_shape=jax.ShapeDtypeStruct((m_pad, Cout), out_dtype),
        grid=(m_pad // tm,),
        in_specs=[
            pl.BlockSpec((tm, K), lambda i: (i, 0)),
            pl.BlockSpec((K, Cout), lambda i: (0, 0)),
            pl.BlockSpec((1, Cout), lambda i: (0, 0)),
            pl.BlockSpec((tm, Cres), lambda i: (i, 0)),
        ],
        out_specs=pl.BlockSpec((tm, Cout), lambda i: (i, 0)),
        compiler_params=pltpu.CompilerParams(
            dimension_semantics=("parallel",)),
    )(cols_p, w, shift, xres_p)
    return out[:M]


# ----------------------------------------------------------------------------
# im2col glue (plain JAX) — 3x3 conv, padding=1, STATIC integer stride
# ----------------------------------------------------------------------------
def im2col_3x3(x_nhwc, stride):
    N, H, W, C = x_nhwc.shape
    xp = jnp.pad(x_nhwc, ((0, 0), (1, 1), (1, 1), (0, 0)))
    Ho = (H - 1) // stride + 1
    Wo = (W - 1) // stride + 1
    patches = []
    for ki in range(3):
        for kj in range(3):
            patches.append(
                xp[:, ki:ki + (Ho - 1) * stride + 1:stride,
                      kj:kj + (Wo - 1) * stride + 1:stride, :])
    cols = jnp.concatenate(patches, axis=-1)          # (N, Ho, Wo, 9*C)
    return cols.reshape(N * Ho * Wo, 9 * C), Ho, Wo


# ----------------------------------------------------------------------------
# Parameters: synthetic conv weights + eval-mode BN folded into (W*scale, shift)
# ----------------------------------------------------------------------------
def make_params(in_chs, out_chs, key, eps=1e-5):
    def bn_fold(k, c):
        kg, kb, km, kv = jax.random.split(k, 4)
        gamma = jax.random.uniform(kg, (c,), jnp.float32, 0.5, 1.5)
        beta = 0.1 * jax.random.normal(kb, (c,), jnp.float32)
        mean = 0.1 * jax.random.normal(km, (c,), jnp.float32)
        var = jax.random.uniform(kv, (c,), jnp.float32, 0.5, 1.5)
        scale = gamma * jax.lax.rsqrt(var + eps)
        shift = beta - mean * scale
        return scale, shift

    k_w1, k_bn1, k_w2, k_bn2, k_wid, k_bnid = jax.random.split(key, 6)
    w1 = 0.05 * jax.random.normal(k_w1, (3, 3, in_chs, out_chs), jnp.float32)
    s1, b1 = bn_fold(k_bn1, out_chs)
    w1f = w1 * s1                                    # fold BN scale into weights
    w2 = 0.05 * jax.random.normal(k_w2, (3, 3, out_chs, out_chs), jnp.float32)
    s2, b2 = bn_fold(k_bn2, out_chs)
    w2f = w2 * s2
    if in_chs != out_chs:
        wid = 0.05 * jax.random.normal(k_wid, (1, 1, in_chs, out_chs), jnp.float32)
        sid, bid = bn_fold(k_bnid, out_chs)
        widf = wid * sid
    else:
        widf, bid = None, None

    params = {
        "w1": w1f.reshape(9 * in_chs, out_chs).astype(jnp.bfloat16),
        "b1": b1.reshape(1, out_chs),
        "w2": w2f.reshape(9 * out_chs, out_chs).astype(jnp.bfloat16),
        "b2": b2.reshape(1, out_chs),
        "w_id": None if widf is None else widf.reshape(in_chs, out_chs).astype(jnp.bfloat16),
        "b_id": None if bid is None else bid.reshape(1, out_chs),
    }
    ref_params = {   # f32 HWIO copies for the pure-JAX reference check
        "w1": w1f, "b1": b1.reshape(1, out_chs),
        "w2": w2f, "b2": b2.reshape(1, out_chs),
        "w_id": widf, "b_id": None if bid is None else bid.reshape(1, out_chs),
    }
    return params, ref_params


# ----------------------------------------------------------------------------
# Forward pass
# ----------------------------------------------------------------------------
@functools.partial(jax.jit, static_argnames=("strides",))
def resnet_block_forward(params, x_nchw, *, strides):
    x = jnp.transpose(x_nchw, (0, 2, 3, 1))           # NCHW -> NHWC
    N, H, W, Cin = x.shape
    x_bf = x.astype(jnp.bfloat16)
    Cout = params["w1"].shape[1]

    # conv1 (3x3, stride=strides, pad=1) + BN + ReLU  -> bf16 for next layer
    cols1, Ho, Wo = im2col_3x3(x_bf, strides)
    y1 = fused_conv_bn_relu(cols1, params["w1"], params["b1"],
                            out_dtype=jnp.bfloat16)
    y1 = y1.reshape(N, Ho, Wo, Cout)

    # conv2 (3x3, stride=1, pad=1) + BN + shortcut + final ReLU, one kernel
    cols2, _, _ = im2col_3x3(y1, 1)
    if params["w_id"] is not None:
        xs = x_bf[:, ::strides, ::strides, :].reshape(N * Ho * Wo, Cin)
        out = fused_res_proj(cols2, params["w2"], params["b2"],
                             xs, params["w_id"], params["b_id"],
                             out_dtype=jnp.float32)
    else:
        # identity shortcut (valid only when in_chs == out_chs and strides == 1,
        # exactly as the PyTorch module's shapes require)
        out = fused_res_id(cols2, params["w2"], params["b2"],
                           x_bf.reshape(N * H * W, Cin),
                           out_dtype=jnp.float32)
    out = out.reshape(N, Ho, Wo, Cout)
    return jnp.transpose(out, (0, 3, 1, 2))           # NHWC -> NCHW


# ----------------------------------------------------------------------------
# Pure-JAX f32 reference (same folded params) for correctness check
# ----------------------------------------------------------------------------
def _conv_ref(x, w, stride, pad):
    return jax.lax.conv_general_dilated(
        x, w, window_strides=(stride, stride), padding=pad,
        dimension_numbers=("NHWC", "HWIO", "NHWC"))


@functools.partial(jax.jit, static_argnames=("strides",))
def reference_forward(ref_params, x_nchw, *, strides):
    x = jnp.transpose(x_nchw, (0, 2, 3, 1)).astype(jnp.float32)
    y1 = jnp.maximum(
        _conv_ref(x, ref_params["w1"], strides, ((1, 1), (1, 1))) + ref_params["b1"], 0.0)
    y2 = _conv_ref(y1, ref_params["w2"], 1, ((1, 1), (1, 1))) + ref_params["b2"]
    if ref_params["w_id"] is not None:
        sc = _conv_ref(x, ref_params["w_id"], strides, ((0, 0), (0, 0))) + ref_params["b_id"]
    else:
        sc = x
    out = jnp.maximum(y2 + sc, 0.0)
    return jnp.transpose(out, (0, 3, 1, 2))


# ----------------------------------------------------------------------------
if __name__ == "__main__":
    batch, in_chs, out_chs, strides, hw = 2, 64, 128, 2, 16

    key = jax.random.PRNGKey(0)
    k_params, k_x = jax.random.split(key)
    params, ref_params = make_params(in_chs, out_chs, k_params)
    x = jax.random.normal(k_x, (batch, in_chs, hw, hw), jnp.float32)

    out = resnet_block_forward(params, x, strides=strides)
    jax.block_until_ready(out)

    Ho = (hw - 1) // strides + 1
    assert out.shape == (batch, out_chs, Ho, Ho), out.shape
    assert bool(jnp.all(out >= 0.0))                      # final ReLU
    assert bool(jnp.all(jnp.isfinite(out)))

    # compare against the f32 reference (bf16 matmul inputs -> loose tolerance)
    ref = reference_forward(ref_params, x, strides=strides)
    err = float(jnp.max(jnp.abs(out - ref)))
    scale = float(jnp.max(jnp.abs(ref))) + 1e-6
    assert err / scale < 0.05, f"max abs err {err} vs scale {scale}"

    print("KERNEL_OK")
</pallas_src>

<mosaic_0001>
module attributes {stable_mosaic.version = 11 : i64} {
  func.func @conv_bn_relu_kernel(%arg0: i32, %arg1: memref<128x576xbf16, #tpu.memory_space<vmem>>, %arg2: memref<576x128xbf16, #tpu.memory_space<vmem>>, %arg3: memref<1x128xf32, #tpu.memory_space<vmem>>, %arg4: memref<128x128xbf16, #tpu.memory_space<vmem>>) attributes {dimension_semantics = [#tpu.dimension_semantics<parallel>], iteration_bounds = array<i64: 1>, scalar_prefetch = 0 : i64, scratch_operands = 0 : i64, tpu.core_type = #tpu.core_type<tc>, window_params = [{transform_indices = @transform_0, window_bounds = array<i64: 128, 576>}, {pipeline_mode = #tpu.pipeline_mode<synchronous>, transform_indices = @transform_1, window_bounds = array<i64: 576, 128>}, {pipeline_mode = #tpu.pipeline_mode<synchronous>, transform_indices = @transform_2, window_bounds = array<i64: 1, 128>}, {transform_indices = @transform_3, window_bounds = array<i64: 128, 128>}]} {
    %c0 = arith.constant 0 : index
    %c0_0 = arith.constant 0 : index
    %0 = vector.load %arg1[%c0, %c0_0] : memref<128x576xbf16, #tpu.memory_space<vmem>>, vector<128x576xbf16>
    %c0_1 = arith.constant 0 : index
    %c0_2 = arith.constant 0 : index
    %1 = vector.load %arg2[%c0_1, %c0_2] : memref<576x128xbf16, #tpu.memory_space<vmem>>, vector<576x128xbf16>
    %cst = arith.constant dense<0.000000e+00> : vector<128x128xf32>
    %2 = tpu.matmul %0, %1, %cst {dimension_numbers = #tpu.dot_dimension_numbers<[1], [0], [0], [1], [0, 0, 1, 1], [], []>} : vector<128x576xbf16>, vector<576x128xbf16>, vector<128x128xf32> -> vector<128x128xf32>
    %c0_3 = arith.constant 0 : index
    %c0_4 = arith.constant 0 : index
    %3 = vector.load %arg3[%c0_3, %c0_4] : memref<1x128xf32, #tpu.memory_space<vmem>>, vector<1x128xf32>
    %4 = vector.broadcast %3 : vector<1x128xf32> to vector<128x128xf32>
    %5 = arith.addf %2, %4 : vector<128x128xf32>
    %cst_5 = arith.constant 0.000000e+00 : f32
    %6 = vector.broadcast %cst_5 : f32 to vector<128x128xf32>
    %7 = arith.maximumf %5, %6 : vector<128x128xf32>
    %8 = arith.truncf %7 : vector<128x128xf32> to vector<128x128xbf16>
    %c0_6 = arith.constant 0 : index
    %c0_7 = arith.constant 0 : index
    %9 = vector.load %arg4[%c0_6, %c0_7] : memref<128x128xbf16, #tpu.memory_space<vmem>>, vector<128x128xbf16>
    tpu.vector_store %arg4[%c0_6, %c0_7], %8 {strides = array<i32>} : memref<128x128xbf16, #tpu.memory_space<vmem>>, vector<128x128xbf16>,
    return
  }
  func.func @transform_0(%arg0: i32) -> (i32, i32) {
    %c0_i32 = arith.constant 0 : i32
    %c0_i32_0 = arith.constant 0 : i32
    return %arg0, %c0_i32 : i32, i32
  }
  func.func @transform_1(%arg0: i32) -> (i32, i32) {
    %c0_i32 = arith.constant 0 : i32
    %c0_i32_0 = arith.constant 0 : i32
    %c0_i32_1 = arith.constant 0 : i32
    return %c0_i32, %c0_i32_0 : i32, i32
  }
  func.func @transform_2(%arg0: i32) -> (i32, i32) {
    %c0_i32 = arith.constant 0 : i32
    %c0_i32_0 = arith.constant 0 : i32
    %c0_i32_1 = arith.constant 0 : i32
    return %c0_i32, %c0_i32_0 : i32, i32
  }
  func.func @transform_3(%arg0: i32) -> (i32, i32) {
    %c0_i32 = arith.constant 0 : i32
    %c0_i32_0 = arith.constant 0 : i32
    return %arg0, %c0_i32 : i32, i32
  }
}

module attributes {stable_mosaic.version = 11 : i64} {
  func.func @res_proj_kernel(%arg0: i32, %arg1: memref<128x1152xbf16, #tpu.memory_space<vmem>>, %arg2: memref<1152x128xbf16, #tpu.memory_space<vmem>>, %arg3: memref<1x128xf32, #tpu.memory_space<vmem>>, %arg4: memref<128x64xbf16, #tpu.memory_space<vmem>>, %arg5: memref<64x128xbf16, #tpu.memory_space<vmem>>, %arg6: memref<1x128xf32, #tpu.memory_space<vmem>>, %arg7: memref<128x128xf32, #tpu.memory_space<vmem>>) attributes {dimension_semantics = [#tpu.dimension_semantics<parallel>], iteration_bounds = array<i64: 1>, scalar_prefetch = 0 : i64, scratch_operands = 0 : i64, tpu.core_type = #tpu.core_type<tc>, window_params = [{transform_indices = @transform_0, window_bounds = array<i64: 128, 1152>}, {pipeline_mode = #tpu.pipeline_mode<synchronous>, transform_indices = @transform_1, window_bounds = array<i64: 1152, 128>}, {pipeline_mode = #tpu.pipeline_mode<synchronous>, transform_indices = @transform_2, window_bounds = array<i64: 1, 128>}, {transform_indices = @transform_3, window_bounds = array<i64: 128, 64>}, {pipeline_mode = #tpu.pipeline_mode<synchronous>, transform_indices = @transform_4, window_bounds = array<i64: 64, 128>}, {pipeline_mode = #tpu.pipeline_mode<synchronous>, transform_indices = @transform_5, window_bounds = array<i64: 1, 128>}, {transform_indices = @transform_6, window_bounds = array<i64: 128, 128>}]} {
    %c0 = arith.constant 0 : index
    %c0_0 = arith.constant 0 : index
    %0 = vector.load %arg1[%c0, %c0_0] : memref<128x1152xbf16, #tpu.memory_space<vmem>>, vector<128x1152xbf16>
    %c0_1 = arith.constant 0 : index
    %c0_2 = arith.constant 0 : index
    %1 = vector.load %arg2[%c0_1, %c0_2] : memref<1152x128xbf16, #tpu.memory_space<vmem>>, vector<1152x128xbf16>
    %cst = arith.constant dense<0.000000e+00> : vector<128x128xf32>
    %2 = tpu.matmul %0, %1, %cst {dimension_numbers = #tpu.dot_dimension_numbers<[1], [0], [0], [1], [0, 0, 1, 1], [], []>} : vector<128x1152xbf16>, vector<1152x128xbf16>, vector<128x128xf32> -> vector<128x128xf32>
    %c0_3 = arith.constant 0 : index
    %c0_4 = arith.constant 0 : index
    %3 = vector.load %arg3[%c0_3, %c0_4] : memref<1x128xf32, #tpu.memory_space<vmem>>, vector<1x128xf32>
    %4 = vector.broadcast %3 : vector<1x128xf32> to vector<128x128xf32>
    %5 = arith.addf %2, %4 : vector<128x128xf32>
    %c0_5 = arith.constant 0 : index
    %c0_6 = arith.constant 0 : index
    %6 = vector.load %arg4[%c0_5, %c0_6] : memref<128x64xbf16, #tpu.memory_space<vmem>>, vector<128x64xbf16>
    %c0_7 = arith.constant 0 : index
    %c0_8 = arith.constant 0 : index
    %7 = vector.load %arg5[%c0_7, %c0_8] : memref<64x128xbf16, #tpu.memory_space<vmem>>, vector<64x128xbf16>
    %cst_9 = arith.constant dense<0.000000e+00> : vector<128x128xf32>
    %8 = tpu.matmul %6, %7, %cst_9 {dimension_numbers = #tpu.dot_dimension_numbers<[1], [0], [0], [1], [0, 0, 1, 1], [], []>} : vector<128x64xbf16>, vector<64x128xbf16>, vector<128x128xf32> -> vector<128x128xf32>
    %9 = arith.addf %5, %8 : vector<128x128xf32>
    %c0_10 = arith.constant 0 : index
    %c0_11 = arith.constant 0 : index
    %10 = vector.load %arg6[%c0_10, %c0_11] : memref<1x128xf32, #tpu.memory_space<vmem>>, vector<1x128xf32>
    %11 = vector.broadcast %10 : vector<1x128xf32> to vector<128x128xf32>
    %12 = arith.addf %9, %11 : vector<128x128xf32>
    %cst_12 = arith.constant 0.000000e+00 : f32
    %13 = vector.broadcast %cst_12 : f32 to vector<128x128xf32>
    %14 = arith.maximumf %12, %13 : vector<128x128xf32>
    %c0_13 = arith.constant 0 : index
    %c0_14 = arith.constant 0 : index
    %15 = vector.load %arg7[%c0_13, %c0_14] : memref<128x128xf32, #tpu.memory_space<vmem>>, vector<128x128xf32>
    tpu.vector_store %arg7[%c0_13, %c0_14], %14 {strides = array<i32>} : memref<128x128xf32, #tpu.memory_space<vmem>>, vector<128x128xf32>,
    return
  }
  func.func @transform_0(%arg0: i32) -> (i32, i32) {
    %c0_i32 = arith.constant 0 : i32
    %c0_i32_0 = arith.constant 0 : i32
    return %arg0, %c0_i32 : i32, i32
  }
  func.func @transform_1(%arg0: i32) -> (i32, i32) {
    %c0_i32 = arith.constant 0 : i32
    %c0_i32_0 = arith.constant 0 : i32
    %c0_i32_1 = arith.constant 0 : i32
    return %c0_i32, %c0_i32_0 : i32, i32
  }
  func.func @transform_2(%arg0: i32) -> (i32, i32) {
    %c0_i32 = arith.constant 0 : i32
    %c0_i32_0 = arith.constant 0 : i32
    %c0_i32_1 = arith.constant 0 : i32
    return %c0_i32, %c0_i32_0 : i32, i32
  }
  func.func @transform_3(%arg0: i32) -> (i32, i32) {
    %c0_i32 = arith.constant 0 : i32
    %c0_i32_0 = arith.constant 0 : i32
    return %arg0, %c0_i32 : i32, i32
  }
  func.func @transform_4(%arg0: i32) -> (i32, i32) {
    %c0_i32 = arith.constant 0 : i32
    %c0_i32_0 = arith.constant 0 : i32
    %c0_i32_1 = arith.constant 0 : i32
    return %c0_i32, %c0_i32_0 : i32, i32
  }
  func.func @transform_5(%arg0: i32) -> (i32, i32) {
    %c0_i32 = arith.constant 0 : i32
    %c0_i32_0 = arith.constant 0 : i32
    %c0_i32_1 = arith.constant 0 : i32
    return %c0_i32, %c0_i32_0 : i32, i32
  }
  func.func @transform_6(%arg0: i32) -> (i32, i32) {
    %c0_i32 = arith.constant 0 : i32
    %c0_i32_0 = arith.constant 0 : i32
    return %arg0, %c0_i32 : i32, i32
  }
}

</mosaic_0001>

<llo_original>
// kernel: resnet_block_forward.2
$region0: #{resnet_block_forward.2}
  #allocation0 [shape = 'u32[]', space=smem, size = 0x4, offset = 0x4, fixed_abs, tag = 'smem constant byte address 0x4 - core index']
  #allocation1 [shape = 'u32[144,128]{1,0:T(1,128)}', space=vmem, size = 0x12000, scoped, tag = 'internal scratch']
  %s0 = inlined_call_operand.vmem [shape: bf16[128,576], index: 0, kind: input, shape index: {}]
  %s1 = inlined_call_operand.vmem [shape: bf16[576,128], index: 1, kind: input, shape index: {}]
  %s2 = inlined_call_operand.vmem [shape: f32[1,128], index: 2, kind: input, shape index: {}]
  %s3 = inlined_call_operand.vmem [shape: bf16[128,128], index: 3, kind: output, shape index: {}]
  %s4 = sld [smem:[#allocation0]]
  $region22: #{resnet_block_forward.2} parent=0
    _
  %s6 = ssub.s32 1, %s4
  %s7 = scalar_select 0, %s6, %s4
  // Predicated region
  $region2: #{resnet_block_forward.2} parent=0 // pred_check
    _
  $region3: #{resnet_block_forward.2} parent=0 // pred_check_branch
    %9 = sbr.rel (0) target = $region5
  $region4: #{resnet_block_forward.2} parent=0 // pred_region
    _
  $region5: #{resnet_block_forward.2} parent=0 // pred_fallthru
    _
  // Predicated region
  $region6: #{resnet_block_forward.2} parent=0 // pred_check
    _
  $region7: #{resnet_block_forward.2} parent=0 // pred_check_branch
    %11 = sbr.rel (0) target = $region9
  $region8: #{resnet_block_forward.2} parent=0 // pred_region
    _
  $region9: #{resnet_block_forward.2} parent=0 // pred_fallthru
    _
  // Predicated region
  $region10: #{resnet_block_forward.2} parent=0 // pred_check
    _
  $region11: #{resnet_block_forward.2} parent=0 // pred_check_branch
    %13 = sbr.rel (0) target = $region13
  $region12: #{resnet_block_forward.2} parent=0 // pred_region
    _
  $region13: #{resnet_block_forward.2} parent=0 // pred_fallthru
    _
  %v15 = vld [vmem:[%s0] sm:$0xff]
  %v16 = vld [vmem:[%s0 + $0x8] sm:$0xff]
  %v17 = vld [vmem:[%s0 + $0x10] sm:$0xf]
  %v18 = vld [vmem:[%s0 + $0x14] sm:$0xff]
  %v19 = vld [vmem:[%s0 + $0x1c] sm:$0xff]
  %v20 = vld [vmem:[%s0 + $0x24] sm:$0xf]
  %v21 = vld [vmem:[%s0 + $0x28] sm:$0xff]
  %v22 = vld [vmem:[%s0 + $0x30] sm:$0xff]
  %v23 = vld [vmem:[%s0 + $0x38] sm:$0xf]
  %v24 = vld [vmem:[%s0 + $0x3c] sm:$0xff]
  %v25 = vld [vmem:[%s0 + $0x44] sm:$0xff]
  %v26 = vld [vmem:[%s0 + $0x4c] sm:$0xf]
  %v27 = vld [vmem:[%s0 + $0x50] sm:$0xff]
  %v28 = vld [vmem:[%s0 + $0x58] sm:$0xff]
  %v29 = vld [vmem:[%s0 + $0x60] sm:$0xf]
  %v30 = vld [vmem:[%s0 + $0x64] sm:$0xff]
  %v31 = vld [vmem:[%s0 + $0x6c] sm:$0xff]
  %v32 = vld [vmem:[%s0 + $0x74] sm:$0xf]
  %v33 = vld [vmem:[%s0 + $0x78] sm:$0xff]
  %v34 = vld [vmem:[%s0 + $0x80] sm:$0xff]
  %v35 = vld [vmem:[%s0 + $0x88] sm:$0xf]
  %v36 = vld [vmem:[%s0 + $0x8c] sm:$0xff]
  %v37 = vld [vmem:[%s0 + $0x94] sm:$0xff]
  %v38 = vld [vmem:[%s0 + $0x9c] sm:$0xf]
  %v39 = vld [vmem:[%s0 + $0xa0] sm:$0xff]
  %v40 = vld [vmem:[%s0 + $0xa8] sm:$0xff]
  %v41 = vld [vmem:[%s0 + $0xb0] sm:$0xf]
  %v42 = vld [vmem:[%s0 + $0xb4] sm:$0xff]
  %v43 = vld [vmem:[%s0 + $0xbc] sm:$0xff]
  %v44 = vld [vmem:[%s0 + $0xc4] sm:$0xf]
  %v45 = vld [vmem:[%s0 + $0xc8] sm:$0xff]
  %v46 = vld [vmem:[%s0 + $0xd0] sm:$0xff]
  %v47 = vld [vmem:[%s0 + $0xd8] sm:$0xf]
  %v48 = vld [vmem:[%s0 + $0xdc] sm:$0xff]
  %v49 = vld [vmem:[%s0 + $0xe4] sm:$0xff]
  %v50 = vld [vmem:[%s0 + $0xec] sm:$0xf]
  %v51 = vld [vmem:[%s0 + $0xf0] sm:$0xff]
  %v52 = vld [vmem:[%s0 + $0xf8] sm:$0xff]
  %v53 = vld [vmem:[%s0 + $0x100] sm:$0xf]
  %v54 = vld [vmem:[%s0 + $0x104] sm:$0xff]
  %v55 = vld [vmem:[%s0 + $0x10c] sm:$0xff]
  %v56 = vld [vmem:[%s0 + $0x114] sm:$0xf]
  %v57 = vld [vmem:[%s0 + $0x118] sm:$0xff]
  %v58 = vld [vmem:[%s0 + $0x120] sm:$0xff]
  %v59 = vld [vmem:[%s0 + $0x128] sm:$0xf]
  %v60 = vld [vmem:[%s0 + $0x12c] sm:$0xff]
  %v61 = vld [vmem:[%s0 + $0x134] sm:$0xff]
  %v62 = vld [vmem:[%s0 + $0x13c] sm:$0xf]
  %v63 = vld [vmem:[%s1] sm:$0xf]
  %v64 = vld [vmem:[%s1 + $0x4] sm:$0xf]
  %v65 = vld [vmem:[%s1 + $0x8] sm:$0xf]
  %v66 = vld [vmem:[%s1 + $0xc] sm:$0xf]
  %v67 = vld [vmem:[%s1 + $0x10] sm:$0xf]
  %v68 = vld [vmem:[%s1 + $0x14] sm:$0xf]
  %v69 = vld [vmem:[%s1 + $0x18] sm:$0xf]
  %v70 = vld [vmem:[%s1 + $0x1c] sm:$0xf]
  %v71 = vld [vmem:[%s1 + $0x20] sm:$0xf]
  %v72 = vld [vmem:[%s1 + $0x24] sm:$0xf]
  %v73 = vld [vmem:[%s1 + $0x28] sm:$0xf]
  %v74 = vld [vmem:[%s1 + $0x2c] sm:$0xf]
  %v75 = vld [vmem:[%s1 + $0x30] sm:$0xf]
  %v76 = vld [vmem:[%s1 + $0x34] sm:$0xf]
  %v77 = vld [vmem:[%s1 + $0x38] sm:$0xf]
  %v78 = vld [vmem:[%s1 + $0x3c] sm:$0xf]
  %v79 = vld [vmem:[%s1 + $0x40] sm:$0xf]
  %v80 = vld [vmem:[%s1 + $0x44] sm:$0xf]
  %v81 = vld [vmem:[%s1 + $0x48] sm:$0xf]
  %v82 = vld [vmem:[%s1 + $0x4c] sm:$0xf]
  %v83 = vld [vmem:[%s1 + $0x50] sm:$0xf]
  %v84 = vld [vmem:[%s1 + $0x54] sm:$0xf]
  %v85 = vld [vmem:[%s1 + $0x58] sm:$0xf]
  %v86 = vld [vmem:[%s1 + $0x5c] sm:$0xf]
  %v87 = vld [vmem:[%s1 + $0x60] sm:$0xf]
  %v88 = vld [vmem:[%s1 + $0x64] sm:$0xf]
  %v89 = vld [vmem:[%s1 + $0x68] sm:$0xf]
  %v90 = vld [vmem:[%s1 + $0x6c] sm:$0xf]
  %v91 = vld [vmem:[%s1 + $0x70] sm:$0xf]
  %v92 = vld [vmem:[%s1 + $0x74] sm:$0xf]
  %v93 = vld [vmem:[%s1 + $0x78] sm:$0xf]
  %v94 = vld [vmem:[%s1 + $0x7c] sm:$0xf]
  %v95 = vld [vmem:[%s1 + $0x80] sm:$0xf]
  %v96 = vld [vmem:[%s1 + $0x84] sm:$0xf]
  %v97 = vld [vmem:[%s1 + $0x88] sm:$0xf]
  %v98 = vld [vmem:[%s1 + $0x8c] sm:$0xf]
  %v99 = vld [vmem:[%s1 + $0x90] sm:$0xf]
  %v100 = vld [vmem:[%s1 + $0x94] sm:$0xf]
  %v101 = vld [vmem:[%s1 + $0x98] sm:$0xf]
  %v102 = vld [vmem:[%s1 + $0x9c] sm:$0xf]
  %v103 = vld [vmem:[%s1 + $0xa0] sm:$0xf]
  %v104 = vld [vmem:[%s1 + $0xa4] sm:$0xf]
  %v105 = vld [vmem:[%s1 + $0xa8] sm:$0xf]
  %v106 = vld [vmem:[%s1 + $0xac] sm:$0xf]
  %v107 = vld [vmem:[%s1 + $0xb0] sm:$0xf]
  %v108 = vld [vmem:[%s1 + $0xb4] sm:$0xf]
  %v109 = vld [vmem:[%s1 + $0xb8] sm:$0xf]
  %v110 = vld [vmem:[%s1 + $0xbc] sm:$0xf]
  %v111 = vld [vmem:[%s1 + $0xc0] sm:$0xf]
  %v112 = vld [vmem:[%s1 + $0xc4] sm:$0xf]
  %v113 = vld [vmem:[%s1 + $0xc8] sm:$0xf]
  %v114 = vld [vmem:[%s1 + $0xcc] sm:$0xf]
  %v115 = vld [vmem:[%s1 + $0xd0] sm:$0xf]
  %v116 = vld [vmem:[%s1 + $0xd4] sm:$0xf]
  %v117 = vld [vmem:[%s1 + $0xd8] sm:$0xf]
  %v118 = vld [vmem:[%s1 + $0xdc] sm:$0xf]
  %v119 = vld [vmem:[%s1 + $0xe0] sm:$0xf]
  %v120 = vld [vmem:[%s1 + $0xe4] sm:$0xf]
  %v121 = vld [vmem:[%s1 + $0xe8] sm:$0xf]
  %v122 = vld [vmem:[%s1 + $0xec] sm:$0xf]
  %v123 = vld [vmem:[%s1 + $0xf0] sm:$0xf]
  %v124 = vld [vmem:[%s1 + $0xf4] sm:$0xf]
  %v125 = vld [vmem:[%s1 + $0xf8] sm:$0xf]
  %v126 = vld [vmem:[%s1 + $0xfc] sm:$0xf]
  %v127 = vld [vmem:[%s1 + $0x100] sm:$0xf]
  %v128 = vld [vmem:[%s1 + $0x104] sm:$0xf]
  %v129 = vld [vmem:[%s1 + $0x108] sm:$0xf]
  %v130 = vld [vmem:[%s1 + $0x10c] sm:$0xf]
  %v131 = vld [vmem:[%s1 + $0x110] sm:$0xf]
  %v132 = vld [vmem:[%s1 + $0x114] sm:$0xf]
  %v133 = vld [vmem:[%s1 + $0x118] sm:$0xf]
  %v134 = vld [vmem:[%s1 + $0x11c] sm:$0xf]
  %v135 = vld [vmem:[%s2] sm:$0x1]
  %v137 = vlaneseq
  %v138 = vshrl.u32 %v137, 7
  %v139 = vsub.s32 0, %v138
  %v140 = vrot.slane %v135, %v139
  %v190 = vunpack.c.l.b16 %v15
  %v191 = vunpack.c.h.b16 %v15
  %v192 = vunpack.c.l.b16 %v16
  %v193 = vunpack.c.h.b16 %v16
  %v194 = vunpack.c.l.b16 %v17
  %v195 = vunpack.c.l.b16 %v18
  %v196 = vunpack.c.h.b16 %v18
  %v197 = vunpack.c.l.b16 %v19
  %v198 = vunpack.c.h.b16 %v19
  %v199 = vunpack.c.l.b16 %v20
  %v200 = vunpack.c.l.b16 %v21
  %v201 = vunpack.c.h.b16 %v21
  %v202 = vunpack.c.l.b16 %v22
  %v203 = vunpack.c.h.b16 %v22
  %v204 = vunpack.c.l.b16 %v23
  %v205 = vunpack.c.l.b16 %v24
  %v206 = vunpack.c.h.b16 %v24
  %v207 = vunpack.c.l.b16 %v25
  %v208 = vunpack.c.h.b16 %v25
  %v209 = vunpack.c.l.b16 %v26
  %v210 = vunpack.c.l.b16 %v27
  %v211 = vunpack.c.h.b16 %v27
  %v212 = vunpack.c.l.b16 %v28
  %v213 = vunpack.c.h.b16 %v28
  %v214 = vunpack.c.l.b16 %v29
  %v215 = vunpack.c.l.b16 %v30
  %v216 = vunpack.c.h.b16 %v30
  %v217 = vunpack.c.l.b16 %v31
  %v218 = vunpack.c.h.b16 %v31
  %v219 = vunpack.c.l.b16 %v32
  %v220 = vunpack.c.l.b16 %v33
  %v221 = vunpack.c.h.b16 %v33
  %v222 = vunpack.c.l.b16 %v34
  %v223 = vunpack.c.h.b16 %v34
  %v224 = vunpack.c.l.b16 %v35
  %v225 = vunpack.c.l.b16 %v36
  %v226 = vunpack.c.h.b16 %v36
  %v227 = vunpack.c.l.b16 %v37
  %v228 = vunpack.c.h.b16 %v37
  %v229 = vunpack.c.l.b16 %v38
  %v230 = vunpack.c.l.b16 %v39
  %v231 = vunpack.c.h.b16 %v39
  %v232 = vunpack.c.l.b16 %v40
  %v233 = vunpack.c.h.b16 %v40
  %v234 = vunpack.c.l.b16 %v41
  %v235 = vunpack.c.l.b16 %v42
  %v236 = vunpack.c.h.b16 %v42
  %v237 = vunpack.c.l.b16 %v43
  %v238 = vunpack.c.h.b16 %v43
  %v239 = vunpack.c.l.b16 %v44
  %v240 = vunpack.c.l.b16 %v45
  %v241 = vunpack.c.h.b16 %v45
  %v242 = vunpack.c.l.b16 %v46
  %v243 = vunpack.c.h.b16 %v46
  %v244 = vunpack.c.l.b16 %v47
  %v245 = vunpack.c.l.b16 %v48
  %v246 = vunpack.c.h.b16 %v48
  %v247 = vunpack.c.l.b16 %v49
  %v248 = vunpack.c.h.b16 %v49
  %v249 = vunpack.c.l.b16 %v50
  %v250 = vunpack.c.l.b16 %v51
  %v251 = vunpack.c.h.b16 %v51
  %v252 = vunpack.c.l.b16 %v52
  %v253 = vunpack.c.h.b16 %v52
  %v254 = vunpack.c.l.b16 %v53
  %v255 = vunpack.c.l.b16 %v54
  %v256 = vunpack.c.h.b16 %v54
  %v257 = vunpack.c.l.b16 %v55
  %v258 = vunpack.c.h.b16 %v55
  %v259 = vunpack.c.l.b16 %v56
  %v260 = vunpack.c.l.b16 %v57
  %v261 = vunpack.c.h.b16 %v57
  %v262 = vunpack.c.l.b16 %v58
  %v263 = vunpack.c.h.b16 %v58
  %v264 = vunpack.c.l.b16 %v59
  %v265 = vunpack.c.l.b16 %v60
  %v266 = vunpack.c.h.b16 %v60
  %v267 = vunpack.c.l.b16 %v61
  %v268 = vunpack.c.h.b16 %v61
  %v269 = vunpack.c.l.b16 %v62
  %v270 = vpack.c.b16 %v195, %v190
  %v271 = vpack.c.b16 %v196, %v191
  %v272 = vpack.c.b16 %v197, %v192
  %v273 = vpack.c.b16 %v198, %v193
  %v274 = vpack.c.b16 %v199, %v194
  %v275 = vpack.c.b16 %v205, %v200
  %v276 = vpack.c.b16 %v206, %v201
  %v277 = vpack.c.b16 %v207, %v202
  %v278 = vpack.c.b16 %v208, %v203
  %v279 = vpack.c.b16 %v209, %v204
  %v280 = vpack.c.b16 %v215, %v210
  %v281 = vpack.c.b16 %v216, %v211
  %v282 = vpack.c.b16 %v217, %v212
  %v283 = vpack.c.b16 %v218, %v213
  %v284 = vpack.c.b16 %v219, %v214
  %v285 = vpack.c.b16 %v225, %v220
  %v286 = vpack.c.b16 %v226, %v221
  %v287 = vpack.c.b16 %v227, %v222
  %v288 = vpack.c.b16 %v228, %v223
  %v289 = vpack.c.b16 %v229, %v224
  %v290 = vpack.c.b16 %v235, %v230
  %v291 = vpack.c.b16 %v236, %v231
  %v292 = vpack.c.b16 %v237, %v232
  %v293 = vpack.c.b16 %v238, %v233
  %v294 = vpack.c.b16 %v239, %v234
  %v295 = vpack.c.b16 %v245, %v240
  %v296 = vpack.c.b16 %v246, %v241
  %v297 = vpack.c.b16 %v247, %v242
  %v298 = vpack.c.b16 %v248, %v243
  %v299 = vpack.c.b16 %v249, %v244
  %v300 = vpack.c.b16 %v255, %v250
  %v301 = vpack.c.b16 %v256, %v251
  %v302 = vpack.c.b16 %v257, %v252
  %v303 = vpack.c.b16 %v258, %v253
  %v304 = vpack.c.b16 %v259, %v254
  %v305 = vpack.c.b16 %v265, %v260
  %v306 = vpack.c.b16 %v266, %v261
  %v307 = vpack.c.b16 %v267, %v262
  %v308 = vpack.c.b16 %v268, %v263
  %v309 = vpack.c.b16 %v269, %v264
  %v414 = vunpack.c.l.b16 %v63
  %v415 = vunpack.c.l.b16 %v64
  %v416 = vunpack.c.l.b16 %v65
  %v417 = vunpack.c.l.b16 %v66
  %v418 = vunpack.c.l.b16 %v67
  %v419 = vunpack.c.l.b16 %v68
  %v420 = vunpack.c.l.b16 %v69
  %v421 = vunpack.c.l.b16 %v70
  %v422 = vunpack.c.l.b16 %v71
  %v423 = vunpack.c.l.b16 %v72
  %v424 = vunpack.c.l.b16 %v73
  %v425 = vunpack.c.l.b16 %v74
  %v426 = vunpack.c.l.b16 %v75
  %v427 = vunpack.c.l.b16 %v76
  %v428 = vunpack.c.l.b16 %v77
  %v429 = vunpack.c.l.b16 %v78
  %v430 = vunpack.c.l.b16 %v79
  %v431 = vunpack.c.l.b16 %v80
  %v432 = vunpack.c.l.b16 %v81
  %v433 = vunpack.c.l.b16 %v82
  %v434 = vunpack.c.l.b16 %v83
  %v435 = vunpack.c.l.b16 %v84
  %v436 = vunpack.c.l.b16 %v85
  %v437 = vunpack.c.l.b16 %v86
  %v438 = vunpack.c.l.b16 %v87
  %v439 = vunpack.c.l.b16 %v88
  %v440 = vunpack.c.l.b16 %v89
  %v441 = vunpack.c.l.b16 %v90
  %v442 = vunpack.c.l.b16 %v91
  %v443 = vunpack.c.l.b16 %v92
  %v444 = vunpack.c.l.b16 %v93
  %v445 = vunpack.c.l.b16 %v94
  %v446 = vunpack.c.l.b16 %v95
  %v447 = vunpack.c.l.b16 %v96
  %v448 = vunpack.c.l.b16 %v97
  %v449 = vunpack.c.l.b16 %v98
  %v450 = vunpack.c.l.b16 %v99
  %v451 = vunpack.c.l.b16 %v100
  %v452 = vunpack.c.l.b16 %v101
  %v453 = vunpack.c.l.b16 %v102
  %v454 = vunpack.c.l.b16 %v103
  %v455 = vunpack.c.l.b16 %v104
  %v456 = vunpack.c.l.b16 %v105
  %v457 = vunpack.c.l.b16 %v106
  %v458 = vunpack.c.l.b16 %v107
  %v459 = vunpack.c.l.b16 %v108
  %v460 = vunpack.c.l.b16 %v109
  %v461 = vunpack.c.l.b16 %v110
  %v462 = vunpack.c.l.b16 %v111
  %v463 = vunpack.c.l.b16 %v112
  %v464 = vunpack.c.l.b16 %v113
  %v465 = vunpack.c.l.b16 %v114
  %v466 = vunpack.c.l.b16 %v115
  %v467 = vunpack.c.l.b16 %v116
  %v468 = vunpack.c.l.b16 %v117
  %v469 = vunpack.c.l.b16 %v118
  %v470 = vunpack.c.l.b16 %v119
  %v471 = vunpack.c.l.b16 %v120
  %v472 = vunpack.c.l.b16 %v121
  %v473 = vunpack.c.l.b16 %v122
  %v474 = vunpack.c.l.b16 %v123
  %v475 = vunpack.c.l.b16 %v124
  %v476 = vunpack.c.l.b16 %v125
  %v477 = vunpack.c.l.b16 %v126
  %v478 = vunpack.c.l.b16 %v127
  %v479 = vunpack.c.l.b16 %v128
  %v480 = vunpack.c.l.b16 %v129
  %v481 = vunpack.c.l.b16 %v130
  %v482 = vunpack.c.l.b16 %v131
  %v483 = vunpack.c.l.b16 %v132
  %v484 = vunpack.c.l.b16 %v133
  %v485 = vunpack.c.l.b16 %v134
  %v486 = vpack.c.b16 %v415, %v414
  %v487 = vpack.c.b16 %v417, %v416
  %v488 = vpack.c.b16 %v419, %v418
  %v489 = vpack.c.b16 %v421, %v420
  %v490 = vpack.c.b16 %v423, %v422
  %v491 = vpack.c.b16 %v425, %v424
  %v492 = vpack.c.b16 %v427, %v426
  %v493 = vpack.c.b16 %v429, %v428
  %v494 = vpack.c.b16 %v431, %v430
  %v495 = vpack.c.b16 %v433, %v432
  %v496 = vpack.c.b16 %v435, %v434
  %v497 = vpack.c.b16 %v437, %v436
  %v498 = vpack.c.b16 %v439, %v438
  %v499 = vpack.c.b16 %v441, %v440
  %v500 = vpack.c.b16 %v443, %v442
  %v501 = vpack.c.b16 %v445, %v444
  %v502 = vpack.c.b16 %v447, %v446
  %v503 = vpack.c.b16 %v449, %v448
  %v504 = vpack.c.b16 %v451, %v450
  %v505 = vpack.c.b16 %v453, %v452
  %v506 = vpack.c.b16 %v455, %v454
  %v507 = vpack.c.b16 %v457, %v456
  %v508 = vpack.c.b16 %v459, %v458
  %v509 = vpack.c.b16 %v461, %v460
  %v510 = vpack.c.b16 %v463, %v462
  %v511 = vpack.c.b16 %v465, %v464
  %v512 = vpack.c.b16 %v467, %v466
  %v513 = vpack.c.b16 %v469, %v468
  %v514 = vpack.c.b16 %v471, %v470
  %v515 = vpack.c.b16 %v473, %v472
  %v516 = vpack.c.b16 %v475, %v474
  %v517 = vpack.c.b16 %v477, %v476
  %v518 = vpack.c.b16 %v479, %v478
  %v519 = vpack.c.b16 %v481, %v480
  %v520 = vpack.c.b16 %v483, %v482
  %v521 = vpack.c.b16 %v485, %v484
  %vm558 = vcmask 523264
  %v560 = vsel %vm558, %v274, 0
  %v563 = vsel %vm558, %v279, 0
  %v566 = vsel %vm558, %v284, 0
  %v569 = vsel %vm558, %v289, 0
  %v572 = vsel %vm558, %v294, 0
  %v575 = vsel %vm558, %v299, 0
  %v578 = vsel %vm558, %v304, 0
  %v581 = vsel %vm558, %v309, 0
  %583 = vmatprep.subr.bf16.mxu0 0
  %584 = vmatpush1.bf16.msra.mxu0 %v493
  %585 = vmatprep.subr.bf16.mxu0 0
  %586 = vmatpush1.bf16.msra.mxu0 %v492
  %587 = vmatprep.subr.bf16.mxu0 0
  %588 = vmatpush1.bf16.msra.mxu0 %v491
  %589 = vmatprep.subr.bf16.mxu0 0
  %590 = vmatpush1.bf16.msra.mxu0 %v490
  %591 = vmatprep.subr.bf16.mxu0 0
  %592 = vmatpush1.bf16.msra.mxu0 %v489
  %593 = vmatprep.subr.bf16.mxu0 0
  %594 = vmatpush1.bf16.msra.mxu0 %v488
  %595 = vmatprep.subr.bf16.mxu0 0
  %596 = vmatpush1.bf16.msra.mxu0 %v487
  %597 = vmatprep.subr.bf16.mxu0 0
  %598 = vmatpush1.bf16.msra.mxu0 %v486
  %599 = vmatprep.subr.bf16.mxu0 0
  %600 = vmatpush2.bf16.msra.mxu0 %v501
  %601 = vmatprep.subr.bf16.mxu0 0
  %602 = vmatpush2.bf16.msra.mxu0 %v500
  %603 = vmatprep.subr.bf16.mxu0 0
  %604 = vmatpush2.bf16.msra.mxu0 %v499
  %605 = vmatprep.subr.bf16.mxu0 0
  %606 = vmatpush2.bf16.msra.mxu0 %v498
  %607 = vmatprep.subr.bf16.mxu0 0
  %608 = vmatpush2.bf16.msra.mxu0 %v497
  %609 = vmatprep.subr.bf16.mxu0 0
  %610 = vmatpush2.bf16.msra.mxu0 %v496
  %611 = vmatprep.subr.bf16.mxu0 0
  %612 = vmatpush2.bf16.msra.mxu0 %v495
  %613 = vmatprep.subr.bf16.mxu0 0
  %614 = vmatpush2.bf16.msra.mxu0 %v494
  %615 = vmatprep.mubr.bf16.mxu0 %v271
  %616 = vmatmul.mubr.bf16.gmra.mxu0 %v270
  %v617 = vpop.f32.mrf.mxu0
  %v618 = vadd.f32 %v140, %v617
  %v619 = vpop.f32.mrf.mxu0
  %v620 = vpop.f32.mrf.mxu0
  %v621 = vadd.f32 %v140, %v620
  %v622 = vpop.f32.mrf.mxu0
  %623 = vmatprep.mubr.bf16.mxu0 %v276
  %624 = vmatmul.mubr.bf16.gmra.mxu0 %v275
  %v625 = vpop.f32.mrf.mxu0
  %v626 = vadd.f32 %v140, %v625
  %v627 = vpop.f32.mrf.mxu0
  %v628 = vpop.f32.mrf.mxu0
  %v629 = vadd.f32 %v140, %v628
  %v630 = vpop.f32.mrf.mxu0
  %631 = vmatprep.mubr.bf16.mxu0 %v281
  %632 = vmatmul.mubr.bf16.gmra.mxu0 %v280
  %v633 = vpop.f32.mrf.mxu0
  %v634 = vadd.f32 %v140, %v633
  %v635 = vpop.f32.mrf.mxu0
  %v636 = vpop.f32.mrf.mxu0
  %v637 = vadd.f32 %v140, %v636
  %v638 = vpop.f32.mrf.mxu0
  %639 = vmatprep.mubr.bf16.mxu0 %v286
  %640 = vmatmul.mubr.bf16.gmra.mxu0 %v285
  %v641 = vpop.f32.mrf.mxu0
  %v642 = vadd.f32 %v140, %v641
  %v643 = vpop.f32.mrf.mxu0
  %v644 = vpop.f32.mrf.mxu0
  %v645 = vadd.f32 %v140, %v644
  %v646 = vpop.f32.mrf.mxu0
  %647 = vmatprep.mubr.bf16.mxu0 %v291
  %648 = vmatmul.mubr.bf16.gmra.mxu0 %v290
  %v649 = vpop.f32.mrf.mxu0
  %v650 = vadd.f32 %v140, %v649
  %v651 = vpop.f32.mrf.mxu0
  %v652 = vpop.f32.mrf.mxu0
  %v653 = vadd.f32 %v140, %v652
  %v654 = vpop.f32.mrf.mxu0
  %655 = vmatprep.mubr.bf16.mxu0 %v296
  %656 = vmatmul.mubr.bf16.gmra.mxu0 %v295
  %v657 = vpop.f32.mrf.mxu0
  %v658 = vadd.f32 %v140, %v657
  %v659 = vpop.f32.mrf.mxu0
  %v660 = vpop.f32.mrf.mxu0
  %v661 = vadd.f32 %v140, %v660
  %v662 = vpop.f32.mrf.mxu0
  %663 = vmatprep.mubr.bf16.mxu0 %v301
  %664 = vmatmul.mubr.bf16.gmra.mxu0 %v300
  %v665 = vpop.f32.mrf.mxu0
  %v666 = vadd.f32 %v140, %v665
  %v667 = vpop.f32.mrf.mxu0
  %v668 = vpop.f32.mrf.mxu0
  %v669 = vadd.f32 %v140, %v668
  %v670 = vpop.f32.mrf.mxu0
  %671 = vmatprep.mubr.bf16.mxu0 %v306
  %672 = vmatmul.mubr.bf16.gmra.mxu0 %v305
  %v673 = vpop.f32.mrf.mxu0
  %v674 = vadd.f32 %v140, %v673
  %v675 = vpop.f32.mrf.mxu0
  %v676 = vpop.f32.mrf.mxu0
  %v677 = vadd.f32 %v140, %v676
  %v678 = vpop.f32.mrf.mxu0
  %679 = vdwg.mxu0
  %680 = vmatprep.subr.bf16.mxu0 0
  %681 = vmatpush1.bf16.msra.mxu0 %v509
  %682 = vmatprep.subr.bf16.mxu0 0
  %683 = vmatpush1.bf16.msra.mxu0 %v508
  %684 = vmatprep.subr.bf16.mxu0 0
  %685 = vmatpush1.bf16.msra.mxu0 %v507
  %686 = vmatprep.subr.bf16.mxu0 0
  %687 = vmatpush1.bf16.msra.mxu0 %v506
  %688 = vmatprep.subr.bf16.mxu0 0
  %689 = vmatpush1.bf16.msra.mxu0 %v505
  %690 = vmatprep.subr.bf16.mxu0 0
  %691 = vmatpush1.bf16.msra.mxu0 %v504
  %692 = vmatprep.subr.bf16.mxu0 0
  %693 = vmatpush1.bf16.msra.mxu0 %v503
  %694 = vmatprep.subr.bf16.mxu0 0
  %695 = vmatpush1.bf16.msra.mxu0 %v502
  %696 = vmatprep.subr.bf16.mxu0 0
  %697 = vmatpush2.bf16.msra.mxu0 %v517
  %698 = vmatprep.subr.bf16.mxu0 0
  %699 = vmatpush2.bf16.msra.mxu0 %v516
  %700 = vmatprep.subr.bf16.mxu0 0
  %701 = vmatpush2.bf16.msra.mxu0 %v515
  %702 = vmatprep.subr.bf16.mxu0 0
  %703 = vmatpush2.bf16.msra.mxu0 %v514
  %704 = vmatprep.subr.bf16.mxu0 0
  %705 = vmatpush2.bf16.msra.mxu0 %v513
  %706 = vmatprep.subr.bf16.mxu0 0
  %707 = vmatpush2.bf16.msra.mxu0 %v512
  %708 = vmatprep.subr.bf16.mxu0 0
  %709 = vmatpush2.bf16.msra.mxu0 %v511
  %710 = vmatprep.subr.bf16.mxu0 0
  %711 = vmatpush2.bf16.msra.mxu0 %v510
  %712 = vmatprep.mubr.bf16.mxu0 %v273
  %713 = vmatmul.mubr.bf16.gmra.mxu0 %v272
  %v714 = vpop.f32.mrf.mxu0
  %v715 = vadd.f32 %v618, %v714
  %v716 = vpop.f32.mrf.mxu0
  %v717 = vpop.f32.mrf.mxu0
  %v718 = vadd.f32 %v621, %v717
  %v719 = vpop.f32.mrf.mxu0
  %720 = vmatprep.mubr.bf16.mxu0 %v278
  %721 = vmatmul.mubr.bf16.gmra.mxu0 %v277
  %v722 = vpop.f32.mrf.mxu0
  %v723 = vadd.f32 %v626, %v722
  %v724 = vpop.f32.mrf.mxu0
  %v725 = vpop.f32.mrf.mxu0
  %v726 = vadd.f32 %v629, %v725
  %v727 = vpop.f32.mrf.mxu0
  %728 = vmatprep.mubr.bf16.mxu0 %v283
  %729 = vmatmul.mubr.bf16.gmra.mxu0 %v282
  %v730 = vpop.f32.mrf.mxu0
  %v731 = vadd.f32 %v634, %v730
  %v732 = vpop.f32.mrf.mxu0
  %v733 = vpop.f32.mrf.mxu0
  %v734 = vadd.f32 %v637, %v733
  %v735 = vpop.f32.mrf.mxu0
  %736 = vmatprep.mubr.bf16.mxu0 %v288
  %737 = vmatmul.mubr.bf16.gmra.mxu0 %v287
  %v738 = vpop.f32.mrf.mxu0
  %v739 = vadd.f32 %v642, %v738
  %v740 = vpop.f32.mrf.mxu0
  %v741 = vpop.f32.mrf.mxu0
  %v742 = vadd.f32 %v645, %v741
  %v743 = vpop.f32.mrf.mxu0
  %744 = vmatprep.mubr.bf16.mxu0 %v293
  %745 = vmatmul.mubr.bf16.gmra.mxu0 %v292
  %v746 = vpop.f32.mrf.mxu0
  %v747 = vadd.f32 %v650, %v746
  %v748 = vpop.f32.mrf.mxu0
  %v749 = vpop.f32.mrf.mxu0
  %v750 = vadd.f32 %v653, %v749
  %v751 = vpop.f32.mrf.mxu0
  %752 = vmatprep.mubr.bf16.mxu0 %v298
  %753 = vmatmul.mubr.bf16.gmra.mxu0 %v297
  %v754 = vpop.f32.mrf.mxu0
  %v755 = vadd.f32 %v658, %v754
  %v756 = vpop.f32.mrf.mxu0
  %v757 = vpop.f32.mrf.mxu0
  %v758 = vadd.f32 %v661, %v757
  %v759 = vpop.f32.mrf.mxu0
  %760 = vmatprep.mubr.bf16.mxu0 %v303
  %761 = vmatmul.mubr.bf16.gmra.mxu0 %v302
  %v762 = vpop.f32.mrf.mxu0
  %v763 = vadd.f32 %v666, %v762
  %v764 = vpop.f32.mrf.mxu0
  %v765 = vpop.f32.mrf.mxu0
  %v766 = vadd.f32 %v669, %v765
  %v767 = vpop.f32.mrf.mxu0
  %768 = vmatprep.mubr.bf16.mxu0 %v308
  %769 = vmatmul.mubr.bf16.gmra.mxu0 %v307
  %v770 = vpop.f32.mrf.mxu0
  %v771 = vadd.f32 %v674, %v770
  %v772 = vpop.f32.mrf.mxu0
  %v773 = vpop.f32.mrf.mxu0
  %v774 = vadd.f32 %v677, %v773
  %v775 = vpop.f32.mrf.mxu0
  %776 = vdwg.mxu0
  %777 = vmatprep.subr.bf16.mxu0 0
  %778 = vmatpush1.bf16.msra.mxu0 0
  %779 = vmatprep.subr.bf16.mxu0 0
  %780 = vmatpush1.bf16.msra.mxu0 0
  %781 = vmatprep.subr.bf16.mxu0 0
  %782 = vmatpush1.bf16.msra.mxu0 0
  %783 = vmatprep.subr.bf16.mxu0 0
  %784 = vmatpush1.bf16.msra.mxu0 0
  %785 = vmatprep.subr.bf16.mxu0 0
  %786 = vmatpush1.bf16.msra.mxu0 %v521
  %787 = vmatprep.subr.bf16.mxu0 0
  %788 = vmatpush1.bf16.msra.mxu0 %v520
  %789 = vmatprep.subr.bf16.mxu0 0
  %790 = vmatpush1.bf16.msra.mxu0 %v519
  %791 = vmatprep.subr.bf16.mxu0 0
  %792 = vmatpush1.bf16.msra.mxu0 %v518
  %793 = vmatprep.subr.bf16.mxu0 0
  %794 = vmatpush2.bf16.msra.mxu0 0
  %795 = vmatprep.subr.bf16.mxu0 0
  %796 = vmatpush2.bf16.msra.mxu0 0
  %797 = vmatprep.subr.bf16.mxu0 0
  %798 = vmatpush2.bf16.msra.mxu0 0
  %799 = vmatprep.subr.bf16.mxu0 0
  %800 = vmatpush2.bf16.msra.mxu0 0
  %801 = vmatprep.subr.bf16.mxu0 0
  %802 = vmatpush2.bf16.msra.mxu0 0
  %803 = vmatprep.subr.bf16.mxu0 0
  %804 = vmatpush2.bf16.msra.mxu0 0
  %805 = vmatprep.subr.bf16.mxu0 0
  %806 = vmatpush2.bf16.msra.mxu0 0
  %807 = vmatprep.subr.bf16.mxu0 0
  %808 = vmatpush2.bf16.msra.mxu0 0
  %809 = vmatprep.mubr.bf16.mxu0 0
  %810 = vmatmul.mubr.bf16.gmra.mxu0 %v560
  %v811 = vpop.f32.mrf.mxu0
  %v812 = vadd.f32 %v715, %v811
  %v813 = vpop.f32.mrf.mxu0
  %v814 = vpop.f32.mrf.mxu0
  %v815 = vadd.f32 %v718, %v814
  %v816 = vpop.f32.mrf.mxu0
  %817 = vmatprep.mubr.bf16.mxu0 0
  %818 = vmatmul.mubr.bf16.gmra.mxu0 %v563
  %v819 = vpop.f32.mrf.mxu0
  %v820 = vadd.f32 %v723, %v819
  %v821 = vpop.f32.mrf.mxu0
  %v822 = vpop.f32.mrf.mxu0
  %v823 = vadd.f32 %v726, %v822
  %v824 = vpop.f32.mrf.mxu0
  %825 = vmatprep.mubr.bf16.mxu0 0
  %826 = vmatmul.mubr.bf16.gmra.mxu0 %v566
  %v827 = vpop.f32.mrf.mxu0
  %v828 = vadd.f32 %v731, %v827
  %v829 = vpop.f32.mrf.mxu0
  %v830 = vpop.f32.mrf.mxu0
  %v831 = vadd.f32 %v734, %v830
  %v832 = vpop.f32.mrf.mxu0
  %833 = vmatprep.mubr.bf16.mxu0 0
  %834 = vmatmul.mubr.bf16.gmra.mxu0 %v569
  %v835 = vpop.f32.mrf.mxu0
  %v836 = vadd.f32 %v739, %v835
  %v837 = vpop.f32.mrf.mxu0
  %v838 = vpop.f32.mrf.mxu0
  %v839 = vadd.f32 %v742, %v838
  %v840 = vpop.f32.mrf.mxu0
  %841 = vmatprep.mubr.bf16.mxu0 0
  %842 = vmatmul.mubr.bf16.gmra.mxu0 %v572
  %v843 = vpop.f32.mrf.mxu0
  %v844 = vadd.f32 %v747, %v843
  %v845 = vpop.f32.mrf.mxu0
  %v846 = vpop.f32.mrf.mxu0
  %v847 = vadd.f32 %v750, %v846
  %v848 = vpop.f32.mrf.mxu0
  %849 = vmatprep.mubr.bf16.mxu0 0
  %850 = vmatmul.mubr.bf16.gmra.mxu0 %v575
  %v851 = vpop.f32.mrf.mxu0
  %v852 = vadd.f32 %v755, %v851
  %v853 = vpop.f32.mrf.mxu0
  %v854 = vpop.f32.mrf.mxu0
  %v855 = vadd.f32 %v758, %v854
  %v856 = vpop.f32.mrf.mxu0
  %857 = vmatprep.mubr.bf16.mxu0 0
  %858 = vmatmul.mubr.bf16.gmra.mxu0 %v578
  %v859 = vpop.f32.mrf.mxu0
  %v860 = vadd.f32 %v763, %v859
  %v861 = vpop.f32.mrf.mxu0
  %v862 = vpop.f32.mrf.mxu0
  %v863 = vadd.f32 %v766, %v862
  %v864 = vpop.f32.mrf.mxu0
  %865 = vmatprep.mubr.bf16.mxu0 0
  %866 = vmatmul.mubr.bf16.gmra.mxu0 %v581
  %v867 = vpop.f32.mrf.mxu0
  %v868 = vadd.f32 %v771, %v867
  %v869 = vpop.f32.mrf.mxu0
  %v870 = vpop.f32.mrf.mxu0
  %v871 = vadd.f32 %v774, %v870
  %v872 = vpop.f32.mrf.mxu0
  %873 = vdwg.mxu0
  %v874 = vmax.f32 %v812, 0.0
  %v875 = vmax.f32 %v815, 0.0
  %v876 = vmax.f32 %v820, 0.0
  %v877 = vmax.f32 %v823, 0.0
  %v878 = vmax.f32 %v828, 0.0
  %v879 = vmax.f32 %v831, 0.0
  %v880 = vmax.f32 %v836, 0.0
  %v881 = vmax.f32 %v839, 0.0
  %v882 = vmax.f32 %v844, 0.0
  %v883 = vmax.f32 %v847, 0.0
  %v884 = vmax.f32 %v852, 0.0
  %v885 = vmax.f32 %v855, 0.0
  %v886 = vmax.f32 %v860, 0.0
  %v887 = vmax.f32 %v863, 0.0
  %v888 = vmax.f32 %v868, 0.0
  %v889 = vmax.f32 %v871, 0.0
  %v890 = vpack.c.bf16 %v875, %v874
  %v891 = vpack.c.bf16 %v877, %v876
  %v892 = vpack.c.bf16 %v879, %v878
  %v893 = vpack.c.bf16 %v881, %v880
  %v894 = vpack.c.bf16 %v883, %v882
  %v895 = vpack.c.bf16 %v885, %v884
  %v896 = vpack.c.bf16 %v887, %v886
  %v897 = vpack.c.bf16 %v889, %v888
  %v906 = vunpack.c.l.b16 %v890
  %v907 = vunpack.c.h.b16 %v890
  %v908 = vunpack.c.l.b16 %v891
  %v909 = vunpack.c.h.b16 %v891
  %v910 = vunpack.c.l.b16 %v892
  %v911 = vunpack.c.h.b16 %v892
  %v912 = vunpack.c.l.b16 %v893
  %v913 = vunpack.c.h.b16 %v893
  %v914 = vunpack.c.l.b16 %v894
  %v915 = vunpack.c.h.b16 %v894
  %v916 = vunpack.c.l.b16 %v895
  %v917 = vunpack.c.h.b16 %v895
  %v918 = vunpack.c.l.b16 %v896
  %v919 = vunpack.c.h.b16 %v896
  %v920 = vunpack.c.l.b16 %v897
  %v921 = vunpack.c.h.b16 %v897
  %v922 = vpack.c.b16 %v906, %v906
  %v923 = vpack.c.b16 %v907, %v907
  %v924 = vpack.c.b16 %v908, %v908
  %v925 = vpack.c.b16 %v909, %v909
  %v926 = vpack.c.b16 %v910, %v910
  %v927 = vpack.c.b16 %v911, %v911
  %v928 = vpack.c.b16 %v912, %v912
  %v929 = vpack.c.b16 %v913, %v913
  %v930 = vpack.c.b16 %v914, %v914
  %v931 = vpack.c.b16 %v915, %v915
  %v932 = vpack.c.b16 %v916, %v916
  %v933 = vpack.c.b16 %v917, %v917
  %v934 = vpack.c.b16 %v918, %v918
  %v935 = vpack.c.b16 %v919, %v919
  %v936 = vpack.c.b16 %v920, %v920
  %v937 = vpack.c.b16 %v921, %v921
  %954 = vst [vmem:[%s3] sm:$0xf] %v922
  %955 = vst [vmem:[%s3 + $0x4] sm:$0xf] %v923
  %956 = vst [vmem:[%s3 + $0x8] sm:$0xf] %v924
  %957 = vst [vmem:[%s3 + $0xc] sm:$0xf] %v925
  %958 = vst [vmem:[%s3 + $0x10] sm:$0xf] %v926
  %959 = vst [vmem:[%s3 + $0x14] sm:$0xf] %v927
  %960 = vst [vmem:[%s3 + $0x18] sm:$0xf] %v928
  %961 = vst [vmem:[%s3 + $0x1c] sm:$0xf] %v929
  %962 = vst [vmem:[%s3 + $0x20] sm:$0xf] %v930
  %963 = vst [vmem:[%s3 + $0x24] sm:$0xf] %v931
  %964 = vst [vmem:[%s3 + $0x28] sm:$0xf] %v932
  %965 = vst [vmem:[%s3 + $0x2c] sm:$0xf] %v933
  %966 = vst [vmem:[%s3 + $0x30] sm:$0xf] %v934
  %967 = vst [vmem:[%s3 + $0x34] sm:$0xf] %v935
  %968 = vst [vmem:[%s3 + $0x38] sm:$0xf] %v936
  %969 = vst [vmem:[%s3 + $0x3c] sm:$0xf] %v937
  // Predicated region
  $region14: #{resnet_block_forward.2} parent=0 // pred_check
    _
  $region15: #{resnet_block_forward.2} parent=0 // pred_check_branch
    %971 = sbr.rel (0) target = $region17
  $region16: #{resnet_block_forward.2} parent=0 // pred_region
    _
  $region17: #{resnet_block_forward.2} parent=0 // pred_fallthru
    _
  // Predicated region
  $region18: #{resnet_block_forward.2} parent=0 // pred_check
    _
  $region19: #{resnet_block_forward.2} parent=0 // pred_check_branch
    %973 = sbr.rel (0) target = $region21
  $region20: #{resnet_block_forward.2} parent=0 // pred_region
    _
  $region21: #{resnet_block_forward.2} parent=0 // pred_fallthru
    _

// kernel: resnet_block_forward.3
$region0: #{resnet_block_forward.3}
  #allocation0 [shape = 'u32[]', space=smem, size = 0x4, offset = 0x4, fixed_abs, tag = 'smem constant byte address 0x4 - core index']
  #allocation1 [shape = 'u32[144,128]{1,0:T(1,128)}', space=vmem, size = 0x12000, scoped, tag = 'internal scratch']
  %s0 = inlined_call_operand.vmem [shape: bf16[128,1152], index: 0, kind: input, shape index: {}]
  %s1 = inlined_call_operand.vmem [shape: bf16[1152,128], index: 1, kind: input, shape index: {}]
  %s2 = inlined_call_operand.vmem [shape: f32[1,128], index: 2, kind: input, shape index: {}]
  %s3 = inlined_call_operand.vmem [shape: bf16[128,64], index: 3, kind: input, shape index: {}]
  %s4 = inlined_call_operand.vmem [shape: bf16[64,128], index: 4, kind: input, shape index: {}]
  %s5 = inlined_call_operand.vmem [shape: f32[1,128], index: 5, kind: input, shape index: {}]
  %s6 = inlined_call_operand.hbm [shape: f32[128,128], index: 6, kind: output, shape index: {}]
  %s7 = sld [smem:[#allocation0]]
  $region34: #{resnet_block_forward.3} parent=0
    _
  %s9 = ssub.s32 1, %s7
  %s10 = scalar_select 0, %s9, %s7
  $region1: #{resnet_block_forward.3} parent=0
    #allocation2 [shape = 'u8[65536]{0}', space=vmem, size = 0x10000, scoped, tag = 'output window, operand 0, single buffered']
    #allocation3 [shape = 's32[1]{0}', space=sflag, size = 0x4, scoped, tag = 'scoped memory for resnet_block_forward.3']
    %11 = vsyncpa [#allocation3], 0
    // Predicated region
    $region2: #{resnet_block_forward.3} parent=1 // pred_check
      _
    $region3: #{resnet_block_forward.3} parent=1 // pred_check_branch
      %13 = sbr.rel (0) target = $region5
    $region4: #{resnet_block_forward.3} parent=1 // pred_region
      _
    $region5: #{resnet_block_forward.3} parent=1 // pred_fallthru
      _
    // Predicated region
    $region6: #{resnet_block_forward.3} parent=1 // pred_check
      _
    $region7: #{resnet_block_forward.3} parent=1 // pred_check_branch
      %15 = sbr.rel (0) target = $region9
    $region8: #{resnet_block_forward.3} parent=1 // pred_region
      _
    $region9: #{resnet_block_forward.3} parent=1 // pred_fallthru
      _
    // Predicated region
    $region10: #{resnet_block_forward.3} parent=1 // pred_check
      _
    $region11: #{resnet_block_forward.3} parent=1 // pred_check_branch
      %17 = sbr.rel (0) target = $region13
    $region12: #{resnet_block_forward.3} parent=1 // pred_region
      _
    $region13: #{resnet_block_forward.3} parent=1 // pred_fallthru
      _
    // Predicated region
    $region14: #{resnet_block_forward.3} parent=1 // pred_check
      _
    $region15: #{resnet_block_forward.3} parent=1 // pred_check_branch
      %19 = sbr.rel (0) target = $region17
    $region16: #{resnet_block_forward.3} parent=1 // pred_region
      _
    $region17: #{resnet_block_forward.3} parent=1 // pred_fallthru
      _
    // Predicated region
    $region18: #{resnet_block_forward.3} parent=1 // pred_check
      _
    $region19: #{resnet_block_forward.3} parent=1 // pred_check_branch
      %21 = sbr.rel (0) target = $region21
    $region20: #{resnet_block_forward.3} parent=1 // pred_region
      _
    $region21: #{resnet_block_forward.3} parent=1 // pred_fallthru
      _
    // Predicated region
    $region22: #{resnet_block_forward.3} parent=1 // pred_check
      _
    $region23: #{resnet_block_forward.3} parent=1 // pred_check_branch
      %23 = sbr.rel (0) target = $region25
    $region24: #{resnet_block_forward.3} parent=1 // pred_region
      _
    $region25: #{resnet_block_forward.3} parent=1 // pred_fallthru
      _
    %v25 = vld [vmem:[%s0] sm:$0xff]
    %v26 = vld [vmem:[%s0 + $0x8] sm:$0xff]
    %v27 = vld [vmem:[%s0 + $0x10] sm:$0xff]
    %v28 = vld [vmem:[%s0 + $0x18] sm:$0xff]
    %v29 = vld [vmem:[%s0 + $0x20] sm:$0xf]
    %v30 = vld [vmem:[%s0 + $0x24] sm:$0xff]
    %v31 = vld [vmem:[%s0 + $0x2c] sm:$0xff]
    %v32 = vld [vmem:[%s0 + $0x34] sm:$0xff]
    %v33 = vld [vmem:[%s0 + $0x3c] sm:$0xff]
    %v34 = vld [vmem:[%s0 + $0x44] sm:$0xf]
    %v35 = vld [vmem:[%s0 + $0x48] sm:$0xff]
    %v36 = vld [vmem:[%s0 + $0x50] sm:$0xff]
    %v37 = vld [vmem:[%s0 + $0x58] sm:$0xff]
    %v38 = vld [vmem:[%s0 + $0x60] sm:$0xff]
    %v39 = vld [vmem:[%s0 + $0x68] sm:$0xf]
    %v40 = vld [vmem:[%s0 + $0x6c] sm:$0xff]
    %v41 = vld [vmem:[%s0 + $0x74] sm:$0xff]
    %v42 = vld [vmem:[%s0 + $0x7c] sm:$0xff]
    %v43 = vld [vmem:[%s0 + $0x84] sm:$0xff]
    %v44 = vld [vmem:[%s0 + $0x8c] sm:$0xf]
    %v45 = vld [vmem:[%s0 + $0x90] sm:$0xff]
    %v46 = vld [vmem:[%s0 + $0x98] sm:$0xff]
    %v47 = vld [vmem:[%s0 + $0xa0] sm:$0xff]
    %v48 = vld [vmem:[%s0 + $0xa8] sm:$0xff]
    %v49 = vld [vmem:[%s0 + $0xb0] sm:$0xf]
    %v50 = vld [vmem:[%s0 + $0xb4] sm:$0xff]
    %v51 = vld [vmem:[%s0 + $0xbc] sm:$0xff]
    %v52 = vld [vmem:[%s0 + $0xc4] sm:$0xff]
    %v53 = vld [vmem:[%s0 + $0xcc] sm:$0xff]
    %v54 = vld [vmem:[%s0 + $0xd4] sm:$0xf]
    %v55 = vld [vmem:[%s0 + $0xd8] sm:$0xff]
    %v56 = vld [vmem:[%s0 + $0xe0] sm:$0xff]
    %v57 = vld [vmem:[%s0 + $0xe8] sm:$0xff]
    %v58 = vld [vmem:[%s0 + $0xf0] sm:$0xff]
    %v59 = vld [vmem:[%s0 + $0xf8] sm:$0xf]
    %v60 = vld [vmem:[%s0 + $0xfc] sm:$0xff]
    %v61 = vld [vmem:[%s0 + $0x104] sm:$0xff]
    %v62 = vld [vmem:[%s0 + $0x10c] sm:$0xff]
    %v63 = vld [vmem:[%s0 + $0x114] sm:$0xff]
    %v64 = vld [vmem:[%s0 + $0x11c] sm:$0xf]
    %v65 = vld [vmem:[%s0 + $0x120] sm:$0xff]
    %v66 = vld [vmem:[%s0 + $0x128] sm:$0xff]
    %v67 = vld [vmem:[%s0 + $0x130] sm:$0xff]
    %v68 = vld [vmem:[%s0 + $0x138] sm:$0xff]
    %v69 = vld [vmem:[%s0 + $0x140] sm:$0xf]
    %v70 = vld [vmem:[%s0 + $0x144] sm:$0xff]
    %v71 = vld [vmem:[%s0 + $0x14c] sm:$0xff]
    %v72 = vld [vmem:[%s0 + $0x154] sm:$0xff]
    %v73 = vld [vmem:[%s0 + $0x15c] sm:$0xff]
    %v74 = vld [vmem:[%s0 + $0x164] sm:$0xf]
    %v75 = vld [vmem:[%s0 + $0x168] sm:$0xff]
    %v76 = vld [vmem:[%s0 + $0x170] sm:$0xff]
    %v77 = vld [vmem:[%s0 + $0x178] sm:$0xff]
    %v78 = vld [vmem:[%s0 + $0x180] sm:$0xff]
    %v79 = vld [vmem:[%s0 + $0x188] sm:$0xf]
    %v80 = vld [vmem:[%s0 + $0x18c] sm:$0xff]
    %v81 = vld [vmem:[%s0 + $0x194] sm:$0xff]
    %v82 = vld [vmem:[%s0 + $0x19c] sm:$0xff]
    %v83 = vld [vmem:[%s0 + $0x1a4] sm:$0xff]
    %v84 = vld [vmem:[%s0 + $0x1ac] sm:$0xf]
    %v85 = vld [vmem:[%s0 + $0x1b0] sm:$0xff]
    %v86 = vld [vmem:[%s0 + $0x1b8] sm:$0xff]
    %v87 = vld [vmem:[%s0 + $0x1c0] sm:$0xff]
    %v88 = vld [vmem:[%s0 + $0x1c8] sm:$0xff]
    %v89 = vld [vmem:[%s0 + $0x1d0] sm:$0xf]
    %v90 = vld [vmem:[%s0 + $0x1d4] sm:$0xff]
    %v91 = vld [vmem:[%s0 + $0x1dc] sm:$0xff]
    %v92 = vld [vmem:[%s0 + $0x1e4] sm:$0xff]
    %v93 = vld [vmem:[%s0 + $0x1ec] sm:$0xff]
    %v94 = vld [vmem:[%s0 + $0x1f4] sm:$0xf]
    %v95 = vld [vmem:[%s0 + $0x1f8] sm:$0xff]
    %v96 = vld [vmem:[%s0 + $0x200] sm:$0xff]
    %v97 = vld [vmem:[%s0 + $0x208] sm:$0xff]
    %v98 = vld [vmem:[%s0 + $0x210] sm:$0xff]
    %v99 = vld [vmem:[%s0 + $0x218] sm:$0xf]
    %v100 = vld [vmem:[%s0 + $0x21c] sm:$0xff]
    %v101 = vld [vmem:[%s0 + $0x224] sm:$0xff]
    %v102 = vld [vmem:[%s0 + $0x22c] sm:$0xff]
    %v103 = vld [vmem:[%s0 + $0x234] sm:$0xff]
    %v104 = vld [vmem:[%s0 + $0x23c] sm:$0xf]
    %v105 = vld [vmem:[%s1] sm:$0xf]
    %v106 = vld [vmem:[%s1 + $0x4] sm:$0xf]
    %v107 = vld [vmem:[%s1 + $0x8] sm:$0xf]
    %v108 = vld [vmem:[%s1 + $0xc] sm:$0xf]
    %v109 = vld [vmem:[%s1 + $0x10] sm:$0xf]
    %v110 = vld [vmem:[%s1 + $0x14] sm:$0xf]
    %v111 = vld [vmem:[%s1 + $0x18] sm:$0xf]
    %v112 = vld [vmem:[%s1 + $0x1c] sm:$0xf]
    %v113 = vld [vmem:[%s1 + $0x20] sm:$0xf]
    %v114 = vld [vmem:[%s1 + $0x24] sm:$0xf]
    %v115 = vld [vmem:[%s1 + $0x28] sm:$0xf]
    %v116 = vld [vmem:[%s1 + $0x2c] sm:$0xf]
    %v117 = vld [vmem:[%s1 + $0x30] sm:$0xf]
    %v118 = vld [vmem:[%s1 + $0x34] sm:$0xf]
    %v119 = vld [vmem:[%s1 + $0x38] sm:$0xf]
    %v120 = vld [vmem:[%s1 + $0x3c] sm:$0xf]
    %v121 = vld [vmem:[%s1 + $0x40] sm:$0xf]
    %v122 = vld [vmem:[%s1 + $0x44] sm:$0xf]
    %v123 = vld [vmem:[%s1 + $0x48] sm:$0xf]
    %v124 = vld [vmem:[%s1 + $0x4c] sm:$0xf]
    %v125 = vld [vmem:[%s1 + $0x50] sm:$0xf]
    %v126 = vld [vmem:[%s1 + $0x54] sm:$0xf]
    %v127 = vld [vmem:[%s1 + $0x58] sm:$0xf]
    %v128 = vld [vmem:[%s1 + $0x5c] sm:$0xf]
    %v129 = vld [vmem:[%s1 + $0x60] sm:$0xf]
    %v130 = vld [vmem:[%s1 + $0x64] sm:$0xf]
    %v131 = vld [vmem:[%s1 + $0x68] sm:$0xf]
    %v132 = vld [vmem:[%s1 + $0x6c] sm:$0xf]
    %v133 = vld [vmem:[%s1 + $0x70] sm:$0xf]
    %v134 = vld [vmem:[%s1 + $0x74] sm:$0xf]
    %v135 = vld [vmem:[%s1 + $0x78] sm:$0xf]
    %v136 = vld [vmem:[%s1 + $0x7c] sm:$0xf]
    %v137 = vld [vmem:[%s1 + $0x80] sm:$0xf]
    %v138 = vld [vmem:[%s1 + $0x84] sm:$0xf]
    %v139 = vld [vmem:[%s1 + $0x88] sm:$0xf]
    %v140 = vld [vmem:[%s1 + $0x8c] sm:$0xf]
    %v141 = vld [vmem:[%s1 + $0x90] sm:$0xf]
    %v142 = vld [vmem:[%s1 + $0x94] sm:$0xf]
    %v143 = vld [vmem:[%s1 + $0x98] sm:$0xf]
    %v144 = vld [vmem:[%s1 + $0x9c] sm:$0xf]
    %v145 = vld [vmem:[%s1 + $0xa0] sm:$0xf]
    %v146 = vld [vmem:[%s1 + $0xa4] sm:$0xf]
    %v147 = vld [vmem:[%s1 + $0xa8] sm:$0xf]
    %v148 = vld [vmem:[%s1 + $0xac] sm:$0xf]
    %v149 = vld [vmem:[%s1 + $0xb0] sm:$0xf]
    %v150 = vld [vmem:[%s1 + $0xb4] sm:$0xf]
    %v151 = vld [vmem:[%s1 + $0xb8] sm:$0xf]
    %v152 = vld [vmem:[%s1 + $0xbc] sm:$0xf]
    %v153 = vld [vmem:[%s1 + $0xc0] sm:$0xf]
    %v154 = vld [vmem:[%s1 + $0xc4] sm:$0xf]
    %v155 = vld [vmem:[%s1 + $0xc8] sm:$0xf]
    %v156 = vld [vmem:[%s1 + $0xcc] sm:$0xf]
    %v157 = vld [vmem:[%s1 + $0xd0] sm:$0xf]
    %v158 = vld [vmem:[%s1 + $0xd4] sm:$0xf]
    %v159 = vld [vmem:[%s1 + $0xd8] sm:$0xf]
    %v160 = vld [vmem:[%s1 + $0xdc] sm:$0xf]
    %v161 = vld [vmem:[%s1 + $0xe0] sm:$0xf]
    %v162 = vld [vmem:[%s1 + $0xe4] sm:$0xf]
    %v163 = vld [vmem:[%s1 + $0xe8] sm:$0xf]
    %v164 = vld [vmem:[%s1 + $0xec] sm:$0xf]
    %v165 = vld [vmem:[%s1 + $0xf0] sm:$0xf]
    %v166 = vld [vmem:[%s1 + $0xf4] sm:$0xf]
    %v167 = vld [vmem:[%s1 + $0xf8] sm:$0xf]
    %v168 = vld [vmem:[%s1 + $0xfc] sm:$0xf]
    %v169 = vld [vmem:[%s1 + $0x100] sm:$0xf]
    %v170 = vld [vmem:[%s1 + $0x104] sm:$0xf]
    %v171 = vld [vmem:[%s1 + $0x108] sm:$0xf]
    %v172 = vld [vmem:[%s1 + $0x10c] sm:$0xf]
    %v173 = vld [vmem:[%s1 + $0x110] sm:$0xf]
    %v174 = vld [vmem:[%s1 + $0x114] sm:$0xf]
    %v175 = vld [vmem:[%s1 + $0x118] sm:$0xf]
    %v176 = vld [vmem:[%s1 + $0x11c] sm:$0xf]
    %v177 = vld [vmem:[%s1 + $0x120] sm:$0xf]
    %v178 = vld [vmem:[%s1 + $0x124] sm:$0xf]
    %v179 = vld [vmem:[%s1 + $0x128] sm:$0xf]
    %v180 = vld [vmem:[%s1 + $0x12c] sm:$0xf]
    %v181 = vld [vmem:[%s1 + $0x130] sm:$0xf]
    %v182 = vld [vmem:[%s1 + $0x134] sm:$0xf]
    %v183 = vld [vmem:[%s1 + $0x138] sm:$0xf]
    %v184 = vld [vmem:[%s1 + $0x13c] sm:$0xf]
    %v185 = vld [vmem:[%s1 + $0x140] sm:$0xf]
    %v186 = vld [vmem:[%s1 + $0x144] sm:$0xf]
    %v187 = vld [vmem:[%s1 + $0x148] sm:$0xf]
    %v188 = vld [vmem:[%s1 + $0x14c] sm:$0xf]
    %v189 = vld [vmem:[%s1 + $0x150] sm:$0xf]
    %v190 = vld [vmem:[%s1 + $0x154] sm:$0xf]
    %v191 = vld [vmem:[%s1 + $0x158] sm:$0xf]
    %v192 = vld [vmem:[%s1 + $0x15c] sm:$0xf]
    %v193 = vld [vmem:[%s1 + $0x160] sm:$0xf]
    %v194 = vld [vmem:[%s1 + $0x164] sm:$0xf]
    %v195 = vld [vmem:[%s1 + $0x168] sm:$0xf]
    %v196 = vld [vmem:[%s1 + $0x16c] sm:$0xf]
    %v197 = vld [vmem:[%s1 + $0x170] sm:$0xf]
    %v198 = vld [vmem:[%s1 + $0x174] sm:$0xf]
    %v199 = vld [vmem:[%s1 + $0x178] sm:$0xf]
    %v200 = vld [vmem:[%s1 + $0x17c] sm:$0xf]
    %v201 = vld [vmem:[%s1 + $0x180] sm:$0xf]
    %v202 = vld [vmem:[%s1 + $0x184] sm:$0xf]
    %v203 = vld [vmem:[%s1 + $0x188] sm:$0xf]
    %v204 = vld [vmem:[%s1 + $0x18c] sm:$0xf]
    %v205 = vld [vmem:[%s1 + $0x190] sm:$0xf]
    %v206 = vld [vmem:[%s1 + $0x194] sm:$0xf]
    %v207 = vld [vmem:[%s1 + $0x198] sm:$0xf]
    %v208 = vld [vmem:[%s1 + $0x19c] sm:$0xf]
    %v209 = vld [vmem:[%s1 + $0x1a0] sm:$0xf]
    %v210 = vld [vmem:[%s1 + $0x1a4] sm:$0xf]
    %v211 = vld [vmem:[%s1 + $0x1a8] sm:$0xf]
    %v212 = vld [vmem:[%s1 + $0x1ac] sm:$0xf]
    %v213 = vld [vmem:[%s1 + $0x1b0] sm:$0xf]
    %v214 = vld [vmem:[%s1 + $0x1b4] sm:$0xf]
    %v215 = vld [vmem:[%s1 + $0x1b8] sm:$0xf]
    %v216 = vld [vmem:[%s1 + $0x1bc] sm:$0xf]
    %v217 = vld [vmem:[%s1 + $0x1c0] sm:$0xf]
    %v218 = vld [vmem:[%s1 + $0x1c4] sm:$0xf]
    %v219 = vld [vmem:[%s1 + $0x1c8] sm:$0xf]
    %v220 = vld [vmem:[%s1 + $0x1cc] sm:$0xf]
    %v221 = vld [vmem:[%s1 + $0x1d0] sm:$0xf]
    %v222 = vld [vmem:[%s1 + $0x1d4] sm:$0xf]
    %v223 = vld [vmem:[%s1 + $0x1d8] sm:$0xf]
    %v224 = vld [vmem:[%s1 + $0x1dc] sm:$0xf]
    %v225 = vld [vmem:[%s1 + $0x1e0] sm:$0xf]
    %v226 = vld [vmem:[%s1 + $0x1e4] sm:$0xf]
    %v227 = vld [vmem:[%s1 + $0x1e8] sm:$0xf]
    %v228 = vld [vmem:[%s1 + $0x1ec] sm:$0xf]
    %v229 = vld [vmem:[%s1 + $0x1f0] sm:$0xf]
    %v230 = vld [vmem:[%s1 + $0x1f4] sm:$0xf]
    %v231 = vld [vmem:[%s1 + $0x1f8] sm:$0xf]
    %v232 = vld [vmem:[%s1 + $0x1fc] sm:$0xf]
    %v233 = vld [vmem:[%s1 + $0x200] sm:$0xf]
    %v234 = vld [vmem:[%s1 + $0x204] sm:$0xf]
    %v235 = vld [vmem:[%s1 + $0x208] sm:$0xf]
    %v236 = vld [vmem:[%s1 + $0x20c] sm:$0xf]
    %v237 = vld [vmem:[%s1 + $0x210] sm:$0xf]
    %v238 = vld [vmem:[%s1 + $0x214] sm:$0xf]
    %v239 = vld [vmem:[%s1 + $0x218] sm:$0xf]
    %v240 = vld [vmem:[%s1 + $0x21c] sm:$0xf]
    %v241 = vld [vmem:[%s1 + $0x220] sm:$0xf]
    %v242 = vld [vmem:[%s1 + $0x224] sm:$0xf]
    %v243 = vld [vmem:[%s1 + $0x228] sm:$0xf]
    %v244 = vld [vmem:[%s1 + $0x22c] sm:$0xf]
    %v245 = vld [vmem:[%s1 + $0x230] sm:$0xf]
    %v246 = vld [vmem:[%s1 + $0x234] sm:$0xf]
    %v247 = vld [vmem:[%s1 + $0x238] sm:$0xf]
    %v248 = vld [vmem:[%s1 + $0x23c] sm:$0xf]
    %v249 = vld [vmem:[%s2] sm:$0x1]
    %v251 = vlaneseq
    %v252 = vshrl.u32 %v251, 7
    %v253 = vsub.s32 0, %v252
    %v254 = vrot.slane %v249, %v253
    %v336 = vunpack.c.l.b16 %v25
    %v337 = vunpack.c.h.b16 %v25
    %v338 = vunpack.c.l.b16 %v26
    %v339 = vunpack.c.h.b16 %v26
    %v340 = vunpack.c.l.b16 %v27
    %v341 = vunpack.c.h.b16 %v27
    %v342 = vunpack.c.l.b16 %v28
    %v343 = vunpack.c.h.b16 %v28
    %v344 = vunpack.c.l.b16 %v29
    %v345 = vunpack.c.l.b16 %v30
    %v346 = vunpack.c.h.b16 %v30
    %v347 = vunpack.c.l.b16 %v31
    %v348 = vunpack.c.h.b16 %v31
    %v349 = vunpack.c.l.b16 %v32
    %v350 = vunpack.c.h.b16 %v32
    %v351 = vunpack.c.l.b16 %v33
    %v352 = vunpack.c.h.b16 %v33
    %v353 = vunpack.c.l.b16 %v34
    %v354 = vunpack.c.l.b16 %v35
    %v355 = vunpack.c.h.b16 %v35
    %v356 = vunpack.c.l.b16 %v36
    %v357 = vunpack.c.h.b16 %v36
    %v358 = vunpack.c.l.b16 %v37
    %v359 = vunpack.c.h.b16 %v37
    %v360 = vunpack.c.l.b16 %v38
    %v361 = vunpack.c.h.b16 %v38
    %v362 = vunpack.c.l.b16 %v39
    %v363 = vunpack.c.l.b16 %v40
    %v364 = vunpack.c.h.b16 %v40
    %v365 = vunpack.c.l.b16 %v41
    %v366 = vunpack.c.h.b16 %v41
    %v367 = vunpack.c.l.b16 %v42
    %v368 = vunpack.c.h.b16 %v42
    %v369 = vunpack.c.l.b16 %v43
    %v370 = vunpack.c.h.b16 %v43
    %v371 = vunpack.c.l.b16 %v44
    %v372 = vunpack.c.l.b16 %v45
    %v373 = vunpack.c.h.b16 %v45
    %v374 = vunpack.c.l.b16 %v46
    %v375 = vunpack.c.h.b16 %v46
    %v376 = vunpack.c.l.b16 %v47
    %v377 = vunpack.c.h.b16 %v47
    %v378 = vunpack.c.l.b16 %v48
    %v379 = vunpack.c.h.b16 %v48
    %v380 = vunpack.c.l.b16 %v49
    %v381 = vunpack.c.l.b16 %v50
    %v382 = vunpack.c.h.b16 %v50
    %v383 = vunpack.c.l.b16 %v51
    %v384 = vunpack.c.h.b16 %v51
    %v385 = vunpack.c.l.b16 %v52
    %v386 = vunpack.c.h.b16 %v52
    %v387 = vunpack.c.l.b16 %v53
    %v388 = vunpack.c.h.b16 %v53
    %v389 = vunpack.c.l.b16 %v54
    %v390 = vunpack.c.l.b16 %v55
    %v391 = vunpack.c.h.b16 %v55
    %v392 = vunpack.c.l.b16 %v56
    %v393 = vunpack.c.h.b16 %v56
    %v394 = vunpack.c.l.b16 %v57
    %v395 = vunpack.c.h.b16 %v57
    %v396 = vunpack.c.l.b16 %v58
    %v397 = vunpack.c.h.b16 %v58
    %v398 = vunpack.c.l.b16 %v59
    %v399 = vunpack.c.l.b16 %v60
    %v400 = vunpack.c.h.b16 %v60
    %v401 = vunpack.c.l.b16 %v61
    %v402 = vunpack.c.h.b16 %v61
    %v403 = vunpack.c.l.b16 %v62
    %v404 = vunpack.c.h.b16 %v62
    %v405 = vunpack.c.l.b16 %v63
    %v406 = vunpack.c.h.b16 %v63
    %v407 = vunpack.c.l.b16 %v64
    %v408 = vunpack.c.l.b16 %v65
    %v409 = vunpack.c.h.b16 %v65
    %v410 = vunpack.c.l.b16 %v66
    %v411 = vunpack.c.h.b16 %v66
    %v412 = vunpack.c.l.b16 %v67
    %v413 = vunpack.c.h.b16 %v67
    %v414 = vunpack.c.l.b16 %v68
    %v415 = vunpack.c.h.b16 %v68
    %v416 = vunpack.c.l.b16 %v69
    %v417 = vunpack.c.l.b16 %v70
    %v418 = vunpack.c.h.b16 %v70
    %v419 = vunpack.c.l.b16 %v71
    %v420 = vunpack.c.h.b16 %v71
    %v421 = vunpack.c.l.b16 %v72
    %v422 = vunpack.c.h.b16 %v72
    %v423 = vunpack.c.l.b16 %v73
    %v424 = vunpack.c.h.b16 %v73
    %v425 = vunpack.c.l.b16 %v74
    %v426 = vunpack.c.l.b16 %v75
    %v427 = vunpack.c.h.b16 %v75
    %v428 = vunpack.c.l.b16 %v76
    %v429 = vunpack.c.h.b16 %v76
    %v430 = vunpack.c.l.b16 %v77
    %v431 = vunpack.c.h.b16 %v77
    %v432 = vunpack.c.l.b16 %v78
    %v433 = vunpack.c.h.b16 %v78
    %v434 = vunpack.c.l.b16 %v79
    %v435 = vunpack.c.l.b16 %v80
    %v436 = vunpack.c.h.b16 %v80
    %v437 = vunpack.c.l.b16 %v81
    %v438 = vunpack.c.h.b16 %v81
    %v439 = vunpack.c.l.b16 %v82
    %v440 = vunpack.c.h.b16 %v82
    %v441 = vunpack.c.l.b16 %v83
    %v442 = vunpack.c.h.b16 %v83
    %v443 = vunpack.c.l.b16 %v84
    %v444 = vunpack.c.l.b16 %v85
    %v445 = vunpack.c.h.b16 %v85
    %v446 = vunpack.c.l.b16 %v86
    %v447 = vunpack.c.h.b16 %v86
    %v448 = vunpack.c.l.b16 %v87
    %v449 = vunpack.c.h.b16 %v87
    %v450 = vunpack.c.l.b16 %v88
    %v451 = vunpack.c.h.b16 %v88
    %v452 = vunpack.c.l.b16 %v89
    %v453 = vunpack.c.l.b16 %v90
    %v454 = vunpack.c.h.b16 %v90
    %v455 = vunpack.c.l.b16 %v91
    %v456 = vunpack.c.h.b16 %v91
    %v457 = vunpack.c.l.b16 %v92
    %v458 = vunpack.c.h.b16 %v92
    %v459 = vunpack.c.l.b16 %v93
    %v460 = vunpack.c.h.b16 %v93
    %v461 = vunpack.c.l.b16 %v94
    %v462 = vunpack.c.l.b16 %v95
    %v463 = vunpack.c.h.b16 %v95
    %v464 = vunpack.c.l.b16 %v96
    %v465 = vunpack.c.h.b16 %v96
    %v466 = vunpack.c.l.b16 %v97
    %v467 = vunpack.c.h.b16 %v97
    %v468 = vunpack.c.l.b16 %v98
    %v469 = vunpack.c.h.b16 %v98
    %v470 = vunpack.c.l.b16 %v99
    %v471 = vunpack.c.l.b16 %v100
    %v472 = vunpack.c.h.b16 %v100
    %v473 = vunpack.c.l.b16 %v101
    %v474 = vunpack.c.h.b16 %v101
    %v475 = vunpack.c.l.b16 %v102
    %v476 = vunpack.c.h.b16 %v102
    %v477 = vunpack.c.l.b16 %v103
    %v478 = vunpack.c.h.b16 %v103
    %v479 = vunpack.c.l.b16 %v104
    %v480 = vpack.c.b16 %v345, %v336
    %v481 = vpack.c.b16 %v346, %v337
    %v482 = vpack.c.b16 %v347, %v338
    %v483 = vpack.c.b16 %v348, %v339
    %v484 = vpack.c.b16 %v349, %v340
    %v485 = vpack.c.b16 %v350, %v341
    %v486 = vpack.c.b16 %v351, %v342
    %v487 = vpack.c.b16 %v352, %v343
    %v488 = vpack.c.b16 %v353, %v344
    %v489 = vpack.c.b16 %v363, %v354
    %v490 = vpack.c.b16 %v364, %v355
    %v491 = vpack.c.b16 %v365, %v356
    %v492 = vpack.c.b16 %v366, %v357
    %v493 = vpack.c.b16 %v367, %v358
    %v494 = vpack.c.b16 %v368, %v359
    %v495 = vpack.c.b16 %v369, %v360
    %v496 = vpack.c.b16 %v370, %v361
    %v497 = vpack.c.b16 %v371, %v362
    %v498 = vpack.c.b16 %v381, %v372
    %v499 = vpack.c.b16 %v382, %v373
    %v500 = vpack.c.b16 %v383, %v374
    %v501 = vpack.c.b16 %v384, %v375
    %v502 = vpack.c.b16 %v385, %v376
    %v503 = vpack.c.b16 %v386, %v377
    %v504 = vpack.c.b16 %v387, %v378
    %v505 = vpack.c.b16 %v388, %v379
    %v506 = vpack.c.b16 %v389, %v380
    %v507 = vpack.c.b16 %v399, %v390
    %v508 = vpack.c.b16 %v400, %v391
    %v509 = vpack.c.b16 %v401, %v392
    %v510 = vpack.c.b16 %v402, %v393
    %v511 = vpack.c.b16 %v403, %v394
    %v512 = vpack.c.b16 %v404, %v395
    %v513 = vpack.c.b16 %v405, %v396
    %v514 = vpack.c.b16 %v406, %v397
    %v515 = vpack.c.b16 %v407, %v398
    %v516 = vpack.c.b16 %v417, %v408
    %v517 = vpack.c.b16 %v418, %v409
    %v518 = vpack.c.b16 %v419, %v410
    %v519 = vpack.c.b16 %v420, %v411
    %v520 = vpack.c.b16 %v421, %v412
    %v521 = vpack.c.b16 %v422, %v413
    %v522 = vpack.c.b16 %v423, %v414
    %v523 = vpack.c.b16 %v424, %v415
    %v524 = vpack.c.b16 %v425, %v416
    %v525 = vpack.c.b16 %v435, %v426
    %v526 = vpack.c.b16 %v436, %v427
    %v527 = vpack.c.b16 %v437, %v428
    %v528 = vpack.c.b16 %v438, %v429
    %v529 = vpack.c.b16 %v439, %v430
    %v530 = vpack.c.b16 %v440, %v431
    %v531 = vpack.c.b16 %v441, %v432
    %v532 = vpack.c.b16 %v442, %v433
    %v533 = vpack.c.b16 %v443, %v434
    %v534 = vpack.c.b16 %v453, %v444
    %v535 = vpack.c.b16 %v454, %v445
    %v536 = vpack.c.b16 %v455, %v446
    %v537 = vpack.c.b16 %v456, %v447
    %v538 = vpack.c.b16 %v457, %v448
    %v539 = vpack.c.b16 %v458, %v449
    %v540 = vpack.c.b16 %v459, %v450
    %v541 = vpack.c.b16 %v460, %v451
    %v542 = vpack.c.b16 %v461, %v452
    %v543 = vpack.c.b16 %v471, %v462
    %v544 = vpack.c.b16 %v472, %v463
    %v545 = vpack.c.b16 %v473, %v464
    %v546 = vpack.c.b16 %v474, %v465
    %v547 = vpack.c.b16 %v475, %v466
    %v548 = vpack.c.b16 %v476, %v467
    %v549 = vpack.c.b16 %v477, %v468
    %v550 = vpack.c.b16 %v478, %v469
    %v551 = vpack.c.b16 %v479, %v470
    %v768 = vunpack.c.l.b16 %v105
    %v769 = vunpack.c.l.b16 %v106
    %v770 = vunpack.c.l.b16 %v107
    %v771 = vunpack.c.l.b16 %v108
    %v772 = vunpack.c.l.b16 %v109
    %v773 = vunpack.c.l.b16 %v110
    %v774 = vunpack.c.l.b16 %v111
    %v775 = vunpack.c.l.b16 %v112
    %v776 = vunpack.c.l.b16 %v113
    %v777 = vunpack.c.l.b16 %v114
    %v778 = vunpack.c.l.b16 %v115
    %v779 = vunpack.c.l.b16 %v116
    %v780 = vunpack.c.l.b16 %v117
    %v781 = vunpack.c.l.b16 %v118
    %v782 = vunpack.c.l.b16 %v119
    %v783 = vunpack.c.l.b16 %v120
    %v784 = vunpack.c.l.b16 %v121
    %v785 = vunpack.c.l.b16 %v122
    %v786 = vunpack.c.l.b16 %v123
    %v787 = vunpack.c.l.b16 %v124
    %v788 = vunpack.c.l.b16 %v125
    %v789 = vunpack.c.l.b16 %v126
    %v790 = vunpack.c.l.b16 %v127
    %v791 = vunpack.c.l.b16 %v128
    %v792 = vunpack.c.l.b16 %v129
    %v793 = vunpack.c.l.b16 %v130
    %v794 = vunpack.c.l.b16 %v131
    %v795 = vunpack.c.l.b16 %v132
    %v796 = vunpack.c.l.b16 %v133
    %v797 = vunpack.c.l.b16 %v134
    %v798 = vunpack.c.l.b16 %v135
    %v799 = vunpack.c.l.b16 %v136
    %v800 = vunpack.c.l.b16 %v137
    %v801 = vunpack.c.l.b16 %v138
    %v802 = vunpack.c.l.b16 %v139
    %v803 = vunpack.c.l.b16 %v140
    %v804 = vunpack.c.l.b16 %v141
    %v805 = vunpack.c.l.b16 %v142
    %v806 = vunpack.c.l.b16 %v143
    %v807 = vunpack.c.l.b16 %v144
    %v808 = vunpack.c.l.b16 %v145
    %v809 = vunpack.c.l.b16 %v146
    %v810 = vunpack.c.l.b16 %v147
    %v811 = vunpack.c.l.b16 %v148
    %v812 = vunpack.c.l.b16 %v149
    %v813 = vunpack.c.l.b16 %v150
    %v814 = vunpack.c.l.b16 %v151
    %v815 = vunpack.c.l.b16 %v152
    %v816 = vunpack.c.l.b16 %v153
    %v817 = vunpack.c.l.b16 %v154
    %v818 = vunpack.c.l.b16 %v155
    %v819 = vunpack.c.l.b16 %v156
    %v820 = vunpack.c.l.b16 %v157
    %v821 = vunpack.c.l.b16 %v158
    %v822 = vunpack.c.l.b16 %v159
    %v823 = vunpack.c.l.b16 %v160
    %v824 = vunpack.c.l.b16 %v161
    %v825 = vunpack.c.l.b16 %v162
    %v826 = vunpack.c.l.b16 %v163
    %v827 = vunpack.c.l.b16 %v164
    %v828 = vunpack.c.l.b16 %v165
    %v829 = vunpack.c.l.b16 %v166
    %v830 = vunpack.c.l.b16 %v167
    %v831 = vunpack.c.l.b16 %v168
    %v832 = vunpack.c.l.b16 %v169
    %v833 = vunpack.c.l.b16 %v170
    %v834 = vunpack.c.l.b16 %v171
    %v835 = vunpack.c.l.b16 %v172
    %v836 = vunpack.c.l.b16 %v173
    %v837 = vunpack.c.l.b16 %v174
    %v838 = vunpack.c.l.b16 %v175
    %v839 = vunpack.c.l.b16 %v176
    %v840 = vunpack.c.l.b16 %v177
    %v841 = vunpack.c.l.b16 %v178
    %v842 = vunpack.c.l.b16 %v179
    %v843 = vunpack.c.l.b16 %v180
    %v844 = vunpack.c.l.b16 %v181
    %v845 = vunpack.c.l.b16 %v182
    %v846 = vunpack.c.l.b16 %v183
    %v847 = vunpack.c.l.b16 %v184
    %v848 = vunpack.c.l.b16 %v185
    %v849 = vunpack.c.l.b16 %v186
    %v850 = vunpack.c.l.b16 %v187
    %v851 = vunpack.c.l.b16 %v188
    %v852 = vunpack.c.l.b16 %v189
    %v853 = vunpack.c.l.b16 %v190
    %v854 = vunpack.c.l.b16 %v191
    %v855 = vunpack.c.l.b16 %v192
    %v856 = vunpack.c.l.b16 %v193
    %v857 = vunpack.c.l.b16 %v194
    %v858 = vunpack.c.l.b16 %v195
    %v859 = vunpack.c.l.b16 %v196
    %v860 = vunpack.c.l.b16 %v197
    %v861 = vunpack.c.l.b16 %v198
    %v862 = vunpack.c.l.b16 %v199
    %v863 = vunpack.c.l.b16 %v200
    %v864 = vunpack.c.l.b16 %v201
    %v865 = vunpack.c.l.b16 %v202
    %v866 = vunpack.c.l.b16 %v203
    %v867 = vunpack.c.l.b16 %v204
    %v868 = vunpack.c.l.b16 %v205
    %v869 = vunpack.c.l.b16 %v206
    %v870 = vunpack.c.l.b16 %v207
    %v871 = vunpack.c.l.b16 %v208
    %v872 = vunpack.c.l.b16 %v209
    %v873 = vunpack.c.l.b16 %v210
    %v874 = vunpack.c.l.b16 %v211
    %v875 = vunpack.c.l.b16 %v212
    %v876 = vunpack.c.l.b16 %v213
    %v877 = vunpack.c.l.b16 %v214
    %v878 = vunpack.c.l.b16 %v215
    %v879 = vunpack.c.l.b16 %v216
    %v880 = vunpack.c.l.b16 %v217
    %v881 = vunpack.c.l.b16 %v218
    %v882 = vunpack.c.l.b16 %v219
    %v883 = vunpack.c.l.b16 %v220
    %v884 = vunpack.c.l.b16 %v221
    %v885 = vunpack.c.l.b16 %v222
    %v886 = vunpack.c.l.b16 %v223
    %v887 = vunpack.c.l.b16 %v224
    %v888 = vunpack.c.l.b16 %v225
    %v889 = vunpack.c.l.b16 %v226
    %v890 = vunpack.c.l.b16 %v227
    %v891 = vunpack.c.l.b16 %v228
    %v892 = vunpack.c.l.b16 %v229
    %v893 = vunpack.c.l.b16 %v230
    %v894 = vunpack.c.l.b16 %v231
    %v895 = vunpack.c.l.b16 %v232
    %v896 = vunpack.c.l.b16 %v233
    %v897 = vunpack.c.l.b16 %v234
    %v898 = vunpack.c.l.b16 %v235
    %v899 = vunpack.c.l.b16 %v236
    %v900 = vunpack.c.l.b16 %v237
    %v901 = vunpack.c.l.b16 %v238
    %v902 = vunpack.c.l.b16 %v239
    %v903 = vunpack.c.l.b16 %v240
    %v904 = vunpack.c.l.b16 %v241
    %v905 = vunpack.c.l.b16 %v242
    %v906 = vunpack.c.l.b16 %v243
    %v907 = vunpack.c.l.b16 %v244
    %v908 = vunpack.c.l.b16 %v245
    %v909 = vunpack.c.l.b16 %v246
    %v910 = vunpack.c.l.b16 %v247
    %v911 = vunpack.c.l.b16 %v248
    %v912 = vpack.c.b16 %v769, %v768
    %v913 = vpack.c.b16 %v771, %v770
    %v914 = vpack.c.b16 %v773, %v772
    %v915 = vpack.c.b16 %v775, %v774
    %v916 = vpack.c.b16 %v777, %v776
    %v917 = vpack.c.b16 %v779, %v778
    %v918 = vpack.c.b16 %v781, %v780
    %v919 = vpack.c.b16 %v783, %v782
    %v920 = vpack.c.b16 %v785, %v784
    %v921 = vpack.c.b16 %v787, %v786
    %v922 = vpack.c.b16 %v789, %v788
    %v923 = vpack.c.b16 %v791, %v790
    %v924 = vpack.c.b16 %v793, %v792
    %v925 = vpack.c.b16 %v795, %v794
    %v926 = vpack.c.b16 %v797, %v796
    %v927 = vpack.c.b16 %v799, %v798
    %v928 = vpack.c.b16 %v801, %v800
    %v929 = vpack.c.b16 %v803, %v802
    %v930 = vpack.c.b16 %v805, %v804
    %v931 = vpack.c.b16 %v807, %v806
    %v932 = vpack.c.b16 %v809, %v808
    %v933 = vpack.c.b16 %v811, %v810
    %v934 = vpack.c.b16 %v813, %v812
    %v935 = vpack.c.b16 %v815, %v814
    %v936 = vpack.c.b16 %v817, %v816
    %v937 = vpack.c.b16 %v819, %v818
    %v938 = vpack.c.b16 %v821, %v820
    %v939 = vpack.c.b16 %v823, %v822
    %v940 = vpack.c.b16 %v825, %v824
    %v941 = vpack.c.b16 %v827, %v826
    %v942 = vpack.c.b16 %v829, %v828
    %v943 = vpack.c.b16 %v831, %v830
    %v944 = vpack.c.b16 %v833, %v832
    %v945 = vpack.c.b16 %v835, %v834
    %v946 = vpack.c.b16 %v837, %v836
    %v947 = vpack.c.b16 %v839, %v838
    %v948 = vpack.c.b16 %v841, %v840
    %v949 = vpack.c.b16 %v843, %v842
    %v950 = vpack.c.b16 %v845, %v844
    %v951 = vpack.c.b16 %v847, %v846
    %v952 = vpack.c.b16 %v849, %v848
    %v953 = vpack.c.b16 %v851, %v850
    %v954 = vpack.c.b16 %v853, %v852
    %v955 = vpack.c.b16 %v855, %v854
    %v956 = vpack.c.b16 %v857, %v856
    %v957 = vpack.c.b16 %v859, %v858
    %v958 = vpack.c.b16 %v861, %v860
    %v959 = vpack.c.b16 %v863, %v862
    %v960 = vpack.c.b16 %v865, %v864
    %v961 = vpack.c.b16 %v867, %v866
    %v962 = vpack.c.b16 %v869, %v868
    %v963 = vpack.c.b16 %v871, %v870
    %v964 = vpack.c.b16 %v873, %v872
    %v965 = vpack.c.b16 %v875, %v874
    %v966 = vpack.c.b16 %v877, %v876
    %v967 = vpack.c.b16 %v879, %v878
    %v968 = vpack.c.b16 %v881, %v880
    %v969 = vpack.c.b16 %v883, %v882
    %v970 = vpack.c.b16 %v885, %v884
    %v971 = vpack.c.b16 %v887, %v886
    %v972 = vpack.c.b16 %v889, %v888
    %v973 = vpack.c.b16 %v891, %v890
    %v974 = vpack.c.b16 %v893, %v892
    %v975 = vpack.c.b16 %v895, %v894
    %v976 = vpack.c.b16 %v897, %v896
    %v977 = vpack.c.b16 %v899, %v898
    %v978 = vpack.c.b16 %v901, %v900
    %v979 = vpack.c.b16 %v903, %v902
    %v980 = vpack.c.b16 %v905, %v904
    %v981 = vpack.c.b16 %v907, %v906
    %v982 = vpack.c.b16 %v909, %v908
    %v983 = vpack.c.b16 %v911, %v910
    %1056 = vmatprep.subr.bf16.mxu0 0
    %1057 = vmatpush1.bf16.msra.mxu0 %v919
    %1058 = vmatprep.subr.bf16.mxu0 0
    %1059 = vmatpush1.bf16.msra.mxu0 %v918
    %1060 = vmatprep.subr.bf16.mxu0 0
    %1061 = vmatpush1.bf16.msra.mxu0 %v917
    %1062 = vmatprep.subr.bf16.mxu0 0
    %1063 = vmatpush1.bf16.msra.mxu0 %v916
    %1064 = vmatprep.subr.bf16.mxu0 0
    %1065 = vmatpush1.bf16.msra.mxu0 %v915
    %1066 = vmatprep.subr.bf16.mxu0 0
    %1067 = vmatpush1.bf16.msra.mxu0 %v914
    %1068 = vmatprep.subr.bf16.mxu0 0
    %1069 = vmatpush1.bf16.msra.mxu0 %v913
    %1070 = vmatprep.subr.bf16.mxu0 0
    %1071 = vmatpush1.bf16.msra.mxu0 %v912
    %1072 = vmatprep.subr.bf16.mxu0 0
    %1073 = vmatpush2.bf16.msra.mxu0 %v927
    %1074 = vmatprep.subr.bf16.mxu0 0
    %1075 = vmatpush2.bf16.msra.mxu0 %v926
    %1076 = vmatprep.subr.bf16.mxu0 0
    %1077 = vmatpush2.bf16.msra.mxu0 %v925
    %1078 = vmatprep.subr.bf16.mxu0 0
    %1079 = vmatpush2.bf16.msra.mxu0 %v924
    %1080 = vmatprep.subr.bf16.mxu0 0
    %1081 = vmatpush2.bf16.msra.mxu0 %v923
    %1082 = vmatprep.subr.bf16.mxu0 0
    %1083 = vmatpush2.bf16.msra.mxu0 %v922
    %1084 = vmatprep.subr.bf16.mxu0 0
    %1085 = vmatpush2.bf16.msra.mxu0 %v921
    %1086 = vmatprep.subr.bf16.mxu0 0
    %1087 = vmatpush2.bf16.msra.mxu0 %v920
    %1088 = vmatprep.mubr.bf16.mxu0 %v481
    %1089 = vmatmul.mubr.bf16.gmra.mxu0 %v480
    %v1090 = vpop.f32.mrf.mxu0
    %v1091 = vadd.f32 %v254, %v1090
    %v1092 = vpop.f32.mrf.mxu0
    %v1093 = vpop.f32.mrf.mxu0
    %v1094 = vadd.f32 %v254, %v1093
    %v1095 = vpop.f32.mrf.mxu0
    %1096 = vmatprep.mubr.bf16.mxu0 %v490
    %1097 = vmatmul.mubr.bf16.gmra.mxu0 %v489
    %v1098 = vpop.f32.mrf.mxu0
    %v1099 = vadd.f32 %v254, %v1098
    %v1100 = vpop.f32.mrf.mxu0
    %v1101 = vpop.f32.mrf.mxu0
    %v1102 = vadd.f32 %v254, %v1101
    %v1103 = vpop.f32.mrf.mxu0
    %1104 = vmatprep.mubr.bf16.mxu0 %v499
    %1105 = vmatmul.mubr.bf16.gmra.mxu0 %v498
    %v1106 = vpop.f32.mrf.mxu0
    %v1107 = vadd.f32 %v254, %v1106
    %v1108 = vpop.f32.mrf.mxu0
    %v1109 = vpop.f32.mrf.mxu0
    %v1110 = vadd.f32 %v254, %v1109
    %v1111 = vpop.f32.mrf.mxu0
    %1112 = vmatprep.mubr.bf16.mxu0 %v508
    %1113 = vmatmul.mubr.bf16.gmra.mxu0 %v507
    %v1114 = vpop.f32.mrf.mxu0
    %v1115 = vadd.f32 %v254, %v1114
    %v1116 = vpop.f32.mrf.mxu0
    %v1117 = vpop.f32.mrf.mxu0
    %v1118 = vadd.f32 %v254, %v1117
    %v1119 = vpop.f32.mrf.mxu0
    %1120 = vmatprep.mubr.bf16.mxu0 %v517
    %1121 = vmatmul.mubr.bf16.gmra.mxu0 %v516
    %v1122 = vpop.f32.mrf.mxu0
    %v1123 = vadd.f32 %v254, %v1122
    %v1124 = vpop.f32.mrf.mxu0
    %v1125 = vpop.f32.mrf.mxu0
    %v1126 = vadd.f32 %v254, %v1125
    %v1127 = vpop.f32.mrf.mxu0
    %1128 = vmatprep.mubr.bf16.mxu0 %v526
    %1129 = vmatmul.mubr.bf16.gmra.mxu0 %v525
    %v1130 = vpop.f32.mrf.mxu0
    %v1131 = vadd.f32 %v254, %v1130
    %v1132 = vpop.f32.mrf.mxu0
    %v1133 = vpop.f32.mrf.mxu0
    %v1134 = vadd.f32 %v254, %v1133
    %v1135 = vpop.f32.mrf.mxu0
    %1136 = vmatprep.mubr.bf16.mxu0 %v535
    %1137 = vmatmul.mubr.bf16.gmra.mxu0 %v534
    %v1138 = vpop.f32.mrf.mxu0
    %v1139 = vadd.f32 %v254, %v1138
    %v1140 = vpop.f32.mrf.mxu0
    %v1141 = vpop.f32.mrf.mxu0
    %v1142 = vadd.f32 %v254, %v1141
    %v1143 = vpop.f32.mrf.mxu0
    %1144 = vmatprep.mubr.bf16.mxu0 %v544
    %1145 = vmatmul.mubr.bf16.gmra.mxu0 %v543
    %v1146 = vpop.f32.mrf.mxu0
    %v1147 = vadd.f32 %v254, %v1146
    %v1148 = vpop.f32.mrf.mxu0
    %v1149 = vpop.f32.mrf.mxu0
    %v1150 = vadd.f32 %v254, %v1149
    %v1151 = vpop.f32.mrf.mxu0
    %1152 = vdwg.mxu0
    %1153 = vmatprep.subr.bf16.mxu0 0
    %1154 = vmatpush1.bf16.msra.mxu0 %v935
    %1155 = vmatprep.subr.bf16.mxu0 0
    %1156 = vmatpush1.bf16.msra.mxu0 %v934
    %1157 = vmatprep.subr.bf16.mxu0 0
    %1158 = vmatpush1.bf16.msra.mxu0 %v933
    %1159 = vmatprep.subr.bf16.mxu0 0
    %1160 = vmatpush1.bf16.msra.mxu0 %v932
    %1161 = vmatprep.subr.bf16.mxu0 0
    %1162 = vmatpush1.bf16.msra.mxu0 %v931
    %1163 = vmatprep.subr.bf16.mxu0 0
    %1164 = vmatpush1.bf16.msra.mxu0 %v930
    %1165 = vmatprep.subr.bf16.mxu0 0
    %1166 = vmatpush1.bf16.msra.mxu0 %v929
    %1167 = vmatprep.subr.bf16.mxu0 0
    %1168 = vmatpush1.bf16.msra.mxu0 %v928
    %1169 = vmatprep.subr.bf16.mxu0 0
    %1170 = vmatpush2.bf16.msra.mxu0 %v943
    %1171 = vmatprep.subr.bf16.mxu0 0
    %1172 = vmatpush2.bf16.msra.mxu0 %v942
    %1173 = vmatprep.subr.bf16.mxu0 0
    %1174 = vmatpush2.bf16.msra.mxu0 %v941
    %1175 = vmatprep.subr.bf16.mxu0 0
    %1176 = vmatpush2.bf16.msra.mxu0 %v940
    %1177 = vmatprep.subr.bf16.mxu0 0
    %1178 = vmatpush2.bf16.msra.mxu0 %v939
    %1179 = vmatprep.subr.bf16.mxu0 0
    %1180 = vmatpush2.bf16.msra.mxu0 %v938
    %1181 = vmatprep.subr.bf16.mxu0 0
    %1182 = vmatpush2.bf16.msra.mxu0 %v937
    %1183 = vmatprep.subr.bf16.mxu0 0
    %1184 = vmatpush2.bf16.msra.mxu0 %v936
    %1185 = vmatprep.mubr.bf16.mxu0 %v483
    %1186 = vmatmul.mubr.bf16.gmra.mxu0 %v482
    %v1187 = vpop.f32.mrf.mxu0
    %v1188 = vadd.f32 %v1091, %v1187
    %v1189 = vpop.f32.mrf.mxu0
    %v1190 = vpop.f32.mrf.mxu0
    %v1191 = vadd.f32 %v1094, %v1190
    %v1192 = vpop.f32.mrf.mxu0
    %1193 = vmatprep.mubr.bf16.mxu0 %v492
    %1194 = vmatmul.mubr.bf16.gmra.mxu0 %v491
    %v1195 = vpop.f32.mrf.mxu0
    %v1196 = vadd.f32 %v1099, %v1195
    %v1197 = vpop.f32.mrf.mxu0
    %v1198 = vpop.f32.mrf.mxu0
    %v1199 = vadd.f32 %v1102, %v1198
    %v1200 = vpop.f32.mrf.mxu0
    %1201 = vmatprep.mubr.bf16.mxu0 %v501
    %1202 = vmatmul.mubr.bf16.gmra.mxu0 %v500
    %v1203 = vpop.f32.mrf.mxu0
    %v1204 = vadd.f32 %v1107, %v1203
    %v1205 = vpop.f32.mrf.mxu0
    %v1206 = vpop.f32.mrf.mxu0
    %v1207 = vadd.f32 %v1110, %v1206
    %v1208 = vpop.f32.mrf.mxu0
    %1209 = vmatprep.mubr.bf16.mxu0 %v510
    %1210 = vmatmul.mubr.bf16.gmra.mxu0 %v509
    %v1211 = vpop.f32.mrf.mxu0
    %v1212 = vadd.f32 %v1115, %v1211
    %v1213 = vpop.f32.mrf.mxu0
    %v1214 = vpop.f32.mrf.mxu0
    %v1215 = vadd.f32 %v1118, %v1214
    %v1216 = vpop.f32.mrf.mxu0
    %1217 = vmatprep.mubr.bf16.mxu0 %v519
    %1218 = vmatmul.mubr.bf16.gmra.mxu0 %v518
    %v1219 = vpop.f32.mrf.mxu0
    %v1220 = vadd.f32 %v1123, %v1219
    %v1221 = vpop.f32.mrf.mxu0
    %v1222 = vpop.f32.mrf.mxu0
    %v1223 = vadd.f32 %v1126, %v1222
    %v1224 = vpop.f32.mrf.mxu0
    %1225 = vmatprep.mubr.bf16.mxu0 %v528
    %1226 = vmatmul.mubr.bf16.gmra.mxu0 %v527
    %v1227 = vpop.f32.mrf.mxu0
    %v1228 = vadd.f32 %v1131, %v1227
    %v1229 = vpop.f32.mrf.mxu0
    %v1230 = vpop.f32.mrf.mxu0
    %v1231 = vadd.f32 %v1134, %v1230
    %v1232 = vpop.f32.mrf.mxu0
    %1233 = vmatprep.mubr.bf16.mxu0 %v537
    %1234 = vmatmul.mubr.bf16.gmra.mxu0 %v536
    %v1235 = vpop.f32.mrf.mxu0
    %v1236 = vadd.f32 %v1139, %v1235
    %v1237 = vpop.f32.mrf.mxu0
    %v1238 = vpop.f32.mrf.mxu0
    %v1239 = vadd.f32 %v1142, %v1238
    %v1240 = vpop.f32.mrf.mxu0
    %1241 = vmatprep.mubr.bf16.mxu0 %v546
    %1242 = vmatmul.mubr.bf16.gmra.mxu0 %v545
    %v1243 = vpop.f32.mrf.mxu0
    %v1244 = vadd.f32 %v1147, %v1243
    %v1245 = vpop.f32.mrf.mxu0
    %v1246 = vpop.f32.mrf.mxu0
    %v1247 = vadd.f32 %v1150, %v1246
    %v1248 = vpop.f32.mrf.mxu0
    %1249 = vdwg.mxu0
    %1250 = vmatprep.subr.bf16.mxu0 0
    %1251 = vmatpush1.bf16.msra.mxu0 %v951
    %1252 = vmatprep.subr.bf16.mxu0 0
    %1253 = vmatpush1.bf16.msra.mxu0 %v950
    %1254 = vmatprep.subr.bf16.mxu0 0
    %1255 = vmatpush1.bf16.msra.mxu0 %v949
    %1256 = vmatprep.subr.bf16.mxu0 0
    %1257 = vmatpush1.bf16.msra.mxu0 %v948
    %1258 = vmatprep.subr.bf16.mxu0 0
    %1259 = vmatpush1.bf16.msra.mxu0 %v947
    %1260 = vmatprep.subr.bf16.mxu0 0
    %1261 = vmatpush1.bf16.msra.mxu0 %v946
    %1262 = vmatprep.subr.bf16.mxu0 0
    %1263 = vmatpush1.bf16.msra.mxu0 %v945
    %1264 = vmatprep.subr.bf16.mxu0 0
    %1265 = vmatpush1.bf16.msra.mxu0 %v944
    %1266 = vmatprep.subr.bf16.mxu0 0
    %1267 = vmatpush2.bf16.msra.mxu0 %v959
    %1268 = vmatprep.subr.bf16.mxu0 0
    %1269 = vmatpush2.bf16.msra.mxu0 %v958
    %1270 = vmatprep.subr.bf16.mxu0 0
    %1271 = vmatpush2.bf16.msra.mxu0 %v957
    %1272 = vmatprep.subr.bf16.mxu0 0
    %1273 = vmatpush2.bf16.msra.mxu0 %v956
    %1274 = vmatprep.subr.bf16.mxu0 0
    %1275 = vmatpush2.bf16.msra.mxu0 %v955
    %1276 = vmatprep.subr.bf16.mxu0 0
    %1277 = vmatpush2.bf16.msra.mxu0 %v954
    %1278 = vmatprep.subr.bf16.mxu0 0
    %1279 = vmatpush2.bf16.msra.mxu0 %v953
    %1280 = vmatprep.subr.bf16.mxu0 0
    %1281 = vmatpush2.bf16.msra.mxu0 %v952
    %1282 = vmatprep.mubr.bf16.mxu0 %v485
    %1283 = vmatmul.mubr.bf16.gmra.mxu0 %v484
    %v1284 = vpop.f32.mrf.mxu0
    %v1285 = vadd.f32 %v1188, %v1284
    %v1286 = vpop.f32.mrf.mxu0
    %v1287 = vpop.f32.mrf.mxu0
    %v1288 = vadd.f32 %v1191, %v1287
    %v1289 = vpop.f32.mrf.mxu0
    %1290 = vmatprep.mubr.bf16.mxu0 %v494
    %1291 = vmatmul.mubr.bf16.gmra.mxu0 %v493
    %v1292 = vpop.f32.mrf.mxu0
    %v1293 = vadd.f32 %v1196, %v1292
    %v1294 = vpop.f32.mrf.mxu0
    %v1295 = vpop.f32.mrf.mxu0
    %v1296 = vadd.f32 %v1199, %v1295
    %v1297 = vpop.f32.mrf.mxu0
    %1298 = vmatprep.mubr.bf16.mxu0 %v503
    %1299 = vmatmul.mubr.bf16.gmra.mxu0 %v502
    %v1300 = vpop.f32.mrf.mxu0
    %v1301 = vadd.f32 %v1204, %v1300
    %v1302 = vpop.f32.mrf.mxu0
    %v1303 = vpop.f32.mrf.mxu0
    %v1304 = vadd.f32 %v1207, %v1303
    %v1305 = vpop.f32.mrf.mxu0
    %1306 = vmatprep.mubr.bf16.mxu0 %v512
    %1307 = vmatmul.mubr.bf16.gmra.mxu0 %v511
    %v1308 = vpop.f32.mrf.mxu0
    %v1309 = vadd.f32 %v1212, %v1308
    %v1310 = vpop.f32.mrf.mxu0
    %v1311 = vpop.f32.mrf.mxu0
    %v1312 = vadd.f32 %v1215, %v1311
    %v1313 = vpop.f32.mrf.mxu0
    %1314 = vmatprep.mubr.bf16.mxu0 %v521
    %1315 = vmatmul.mubr.bf16.gmra.mxu0 %v520
    %v1316 = vpop.f32.mrf.mxu0
    %v1317 = vadd.f32 %v1220, %v1316
    %v1318 = vpop.f32.mrf.mxu0
    %v1319 = vpop.f32.mrf.mxu0
    %v1320 = vadd.f32 %v1223, %v1319
    %v1321 = vpop.f32.mrf.mxu0
    %1322 = vmatprep.mubr.bf16.mxu0 %v530
    %1323 = vmatmul.mubr.bf16.gmra.mxu0 %v529
    %v1324 = vpop.f32.mrf.mxu0
    %v1325 = vadd.f32 %v1228, %v1324
    %v1326 = vpop.f32.mrf.mxu0
    %v1327 = vpop.f32.mrf.mxu0
    %v1328 = vadd.f32 %v1231, %v1327
    %v1329 = vpop.f32.mrf.mxu0
    %1330 = vmatprep.mubr.bf16.mxu0 %v539
    %1331 = vmatmul.mubr.bf16.gmra.mxu0 %v538
    %v1332 = vpop.f32.mrf.mxu0
    %v1333 = vadd.f32 %v1236, %v1332
    %v1334 = vpop.f32.mrf.mxu0
    %v1335 = vpop.f32.mrf.mxu0
    %v1336 = vadd.f32 %v1239, %v1335
    %v1337 = vpop.f32.mrf.mxu0
    %1338 = vmatprep.mubr.bf16.mxu0 %v548
    %1339 = vmatmul.mubr.bf16.gmra.mxu0 %v547
    %v1340 = vpop.f32.mrf.mxu0
    %v1341 = vadd.f32 %v1244, %v1340
    %v1342 = vpop.f32.mrf.mxu0
    %v1343 = vpop.f32.mrf.mxu0
    %v1344 = vadd.f32 %v1247, %v1343
    %v1345 = vpop.f32.mrf.mxu0
    %1346 = vdwg.mxu0
    %1347 = vmatprep.subr.bf16.mxu0 0
    %1348 = vmatpush1.bf16.msra.mxu0 %v967
    %1349 = vmatprep.subr.bf16.mxu0 0
    %1350 = vmatpush1.bf16.msra.mxu0 %v966
    %1351 = vmatprep.subr.bf16.mxu0 0
    %1352 = vmatpush1.bf16.msra.mxu0 %v965
    %1353 = vmatprep.subr.bf16.mxu0 0
    %1354 = vmatpush1.bf16.msra.mxu0 %v964
    %1355 = vmatprep.subr.bf16.mxu0 0
    %1356 = vmatpush1.bf16.msra.mxu0 %v963
    %1357 = vmatprep.subr.bf16.mxu0 0
    %1358 = vmatpush1.bf16.msra.mxu0 %v962
    %1359 = vmatprep.subr.bf16.mxu0 0
    %1360 = vmatpush1.bf16.msra.mxu0 %v961
    %1361 = vmatprep.subr.bf16.mxu0 0
    %1362 = vmatpush1.bf16.msra.mxu0 %v960
    %1363 = vmatprep.subr.bf16.mxu0 0
    %1364 = vmatpush2.bf16.msra.mxu0 %v975
    %1365 = vmatprep.subr.bf16.mxu0 0
    %1366 = vmatpush2.bf16.msra.mxu0 %v974
    %1367 = vmatprep.subr.bf16.mxu0 0
    %1368 = vmatpush2.bf16.msra.mxu0 %v973
    %1369 = vmatprep.subr.bf16.mxu0 0
    %1370 = vmatpush2.bf16.msra.mxu0 %v972
    %1371 = vmatprep.subr.bf16.mxu0 0
    %1372 = vmatpush2.bf16.msra.mxu0 %v971
    %1373 = vmatprep.subr.bf16.mxu0 0
    %1374 = vmatpush2.bf16.msra.mxu0 %v970
    %1375 = vmatprep.subr.bf16.mxu0 0
    %1376 = vmatpush2.bf16.msra.mxu0 %v969
    %1377 = vmatprep.subr.bf16.mxu0 0
    %1378 = vmatpush2.bf16.msra.mxu0 %v968
    %1379 = vmatprep.mubr.bf16.mxu0 %v487
    %1380 = vmatmul.mubr.bf16.gmra.mxu0 %v486
    %v1381 = vpop.f32.mrf.mxu0
    %v1382 = vadd.f32 %v1285, %v1381
    %v1383 = vpop.f32.mrf.mxu0
    %v1384 = vpop.f32.mrf.mxu0
    %v1385 = vadd.f32 %v1288, %v1384
    %v1386 = vpop.f32.mrf.mxu0
    %1387 = vmatprep.mubr.bf16.mxu0 %v496
    %1388 = vmatmul.mubr.bf16.gmra.mxu0 %v495
    %v1389 = vpop.f32.mrf.mxu0
    %v1390 = vadd.f32 %v1293, %v1389
    %v1391 = vpop.f32.mrf.mxu0
    %v1392 = vpop.f32.mrf.mxu0
    %v1393 = vadd.f32 %v1296, %v1392
    %v1394 = vpop.f32.mrf.mxu0
    %1395 = vmatprep.mubr.bf16.mxu0 %v505
    %1396 = vmatmul.mubr.bf16.gmra.mxu0 %v504
    %v1397 = vpop.f32.mrf.mxu0
    %v1398 = vadd.f32 %v1301, %v1397
    %v1399 = vpop.f32.mrf.mxu0
    %v1400 = vpop.f32.mrf.mxu0
    %v1401 = vadd.f32 %v1304, %v1400
    %v1402 = vpop.f32.mrf.mxu0
    %1403 = vmatprep.mubr.bf16.mxu0 %v514
    %1404 = vmatmul.mubr.bf16.gmra.mxu0 %v513
    %v1405 = vpop.f32.mrf.mxu0
    %v1406 = vadd.f32 %v1309, %v1405
    %v1407 = vpop.f32.mrf.mxu0
    %v1408 = vpop.f32.mrf.mxu0
    %v1409 = vadd.f32 %v1312, %v1408
    %v1410 = vpop.f32.mrf.mxu0
    %1411 = vmatprep.mubr.bf16.mxu0 %v523
    %1412 = vmatmul.mubr.bf16.gmra.mxu0 %v522
    %v1413 = vpop.f32.mrf.mxu0
    %v1414 = vadd.f32 %v1317, %v1413
    %v1415 = vpop.f32.mrf.mxu0
    %v1416 = vpop.f32.mrf.mxu0
    %v1417 = vadd.f32 %v1320, %v1416
    %v1418 = vpop.f32.mrf.mxu0
    %1419 = vmatprep.mubr.bf16.mxu0 %v532
    %1420 = vmatmul.mubr.bf16.gmra.mxu0 %v531
    %v1421 = vpop.f32.mrf.mxu0
    %v1422 = vadd.f32 %v1325, %v1421
    %v1423 = vpop.f32.mrf.mxu0
    %v1424 = vpop.f32.mrf.mxu0
    %v1425 = vadd.f32 %v1328, %v1424
    %v1426 = vpop.f32.mrf.mxu0
    %1427 = vmatprep.mubr.bf16.mxu0 %v541
    %1428 = vmatmul.mubr.bf16.gmra.mxu0 %v540
    %v1429 = vpop.f32.mrf.mxu0
    %v1430 = vadd.f32 %v1333, %v1429
    %v1431 = vpop.f32.mrf.mxu0
    %v1432 = vpop.f32.mrf.mxu0
    %v1433 = vadd.f32 %v1336, %v1432
    %v1434 = vpop.f32.mrf.mxu0
    %1435 = vmatprep.mubr.bf16.mxu0 %v550
    %1436 = vmatmul.mubr.bf16.gmra.mxu0 %v549
    %v1437 = vpop.f32.mrf.mxu0
    %v1438 = vadd.f32 %v1341, %v1437
    %v1439 = vpop.f32.mrf.mxu0
    %v1440 = vpop.f32.mrf.mxu0
    %v1441 = vadd.f32 %v1344, %v1440
    %v1442 = vpop.f32.mrf.mxu0
    %1443 = vdwg.mxu0
    %1444 = vmatprep.subr.bf16.mxu0 0
    %1445 = vmatpush1.bf16.msra.mxu0 %v983
    %1446 = vmatprep.subr.bf16.mxu0 0
    %1447 = vmatpush1.bf16.msra.mxu0 %v982
    %1448 = vmatprep.subr.bf16.mxu0 0
    %1449 = vmatpush1.bf16.msra.mxu0 %v981
    %1450 = vmatprep.subr.bf16.mxu0 0
    %1451 = vmatpush1.bf16.msra.mxu0 %v980
    %1452 = vmatprep.subr.bf16.mxu0 0
    %1453 = vmatpush1.bf16.msra.mxu0 %v979
    %1454 = vmatprep.subr.bf16.mxu0 0
    %1455 = vmatpush1.bf16.msra.mxu0 %v978
    %1456 = vmatprep.subr.bf16.mxu0 0
    %1457 = vmatpush1.bf16.msra.mxu0 %v977
    %1458 = vmatprep.subr.bf16.mxu0 0
    %1459 = vmatpush1.bf16.msra.mxu0 %v976
    %1460 = vmatprep.subr.bf16.mxu0 0
    %1461 = vmatpush2.bf16.msra.mxu0 0
    %1462 = vmatprep.subr.bf16.mxu0 0
    %1463 = vmatpush2.bf16.msra.mxu0 0
    %1464 = vmatprep.subr.bf16.mxu0 0
    %1465 = vmatpush2.bf16.msra.mxu0 0
    %1466 = vmatprep.subr.bf16.mxu0 0
    %1467 = vmatpush2.bf16.msra.mxu0 0
    %1468 = vmatprep.subr.bf16.mxu0 0
    %1469 = vmatpush2.bf16.msra.mxu0 0
    %1470 = vmatprep.subr.bf16.mxu0 0
    %1471 = vmatpush2.bf16.msra.mxu0 0
    %1472 = vmatprep.subr.bf16.mxu0 0
    %1473 = vmatpush2.bf16.msra.mxu0 0
    %1474 = vmatprep.subr.bf16.mxu0 0
    %1475 = vmatpush2.bf16.msra.mxu0 0
    %1476 = vmatprep.mubr.bf16.mxu0 0
    %1477 = vmatmul.mubr.bf16.gmra.mxu0 %v488
    %v1478 = vpop.f32.mrf.mxu0
    %v1479 = vadd.f32 %v1382, %v1478
    %v1480 = vpop.f32.mrf.mxu0
    %v1481 = vpop.f32.mrf.mxu0
    %v1482 = vadd.f32 %v1385, %v1481
    %v1483 = vpop.f32.mrf.mxu0
    %1484 = vmatprep.mubr.bf16.mxu0 0
    %1485 = vmatmul.mubr.bf16.gmra.mxu0 %v497
    %v1486 = vpop.f32.mrf.mxu0
    %v1487 = vadd.f32 %v1390, %v1486
    %v1488 = vpop.f32.mrf.mxu0
    %v1489 = vpop.f32.mrf.mxu0
    %v1490 = vadd.f32 %v1393, %v1489
    %v1491 = vpop.f32.mrf.mxu0
    %1492 = vmatprep.mubr.bf16.mxu0 0
    %1493 = vmatmul.mubr.bf16.gmra.mxu0 %v506
    %v1494 = vpop.f32.mrf.mxu0
    %v1495 = vadd.f32 %v1398, %v1494
    %v1496 = vpop.f32.mrf.mxu0
    %v1497 = vpop.f32.mrf.mxu0
    %v1498 = vadd.f32 %v1401, %v1497
    %v1499 = vpop.f32.mrf.mxu0
    %1500 = vmatprep.mubr.bf16.mxu0 0
    %1501 = vmatmul.mubr.bf16.gmra.mxu0 %v515
    %v1502 = vpop.f32.mrf.mxu0
    %v1503 = vadd.f32 %v1406, %v1502
    %v1504 = vpop.f32.mrf.mxu0
    %v1505 = vpop.f32.mrf.mxu0
    %v1506 = vadd.f32 %v1409, %v1505
    %v1507 = vpop.f32.mrf.mxu0
    %1508 = vmatprep.mubr.bf16.mxu0 0
    %1509 = vmatmul.mubr.bf16.gmra.mxu0 %v524
    %v1510 = vpop.f32.mrf.mxu0
    %v1511 = vadd.f32 %v1414, %v1510
    %v1512 = vpop.f32.mrf.mxu0
    %v1513 = vpop.f32.mrf.mxu0
    %v1514 = vadd.f32 %v1417, %v1513
    %v1515 = vpop.f32.mrf.mxu0
    %1516 = vmatprep.mubr.bf16.mxu0 0
    %1517 = vmatmul.mubr.bf16.gmra.mxu0 %v533
    %v1518 = vpop.f32.mrf.mxu0
    %v1519 = vadd.f32 %v1422, %v1518
    %v1520 = vpop.f32.mrf.mxu0
    %v1521 = vpop.f32.mrf.mxu0
    %v1522 = vadd.f32 %v1425, %v1521
    %v1523 = vpop.f32.mrf.mxu0
    %1524 = vmatprep.mubr.bf16.mxu0 0
    %1525 = vmatmul.mubr.bf16.gmra.mxu0 %v542
    %v1526 = vpop.f32.mrf.mxu0
    %v1527 = vadd.f32 %v1430, %v1526
    %v1528 = vpop.f32.mrf.mxu0
    %v1529 = vpop.f32.mrf.mxu0
    %v1530 = vadd.f32 %v1433, %v1529
    %v1531 = vpop.f32.mrf.mxu0
    %1532 = vmatprep.mubr.bf16.mxu0 0
    %1533 = vmatmul.mubr.bf16.gmra.mxu0 %v551
    %v1534 = vpop.f32.mrf.mxu0
    %v1535 = vadd.f32 %v1438, %v1534
    %v1536 = vpop.f32.mrf.mxu0
    %v1537 = vpop.f32.mrf.mxu0
    %v1538 = vadd.f32 %v1441, %v1537
    %v1539 = vpop.f32.mrf.mxu0
    %1540 = vdwg.mxu0
    %v1541 = vld [vmem:[%s3] sm:$0xf]
    %v1542 = vld [vmem:[%s3 + $0x4] sm:$0xf]
    %v1543 = vld [vmem:[%s3 + $0x8] sm:$0xf]
    %v1544 = vld [vmem:[%s3 + $0xc] sm:$0xf]
    %v1545 = vld [vmem:[%s3 + $0x10] sm:$0xf]
    %v1546 = vld [vmem:[%s3 + $0x14] sm:$0xf]
    %v1547 = vld [vmem:[%s3 + $0x18] sm:$0xf]
    %v1548 = vld [vmem:[%s3 + $0x1c] sm:$0xf]
    %v1549 = vld [vmem:[%s3 + $0x20] sm:$0xf]
    %v1550 = vld [vmem:[%s3 + $0x24] sm:$0xf]
    %v1551 = vld [vmem:[%s3 + $0x28] sm:$0xf]
    %v1552 = vld [vmem:[%s3 + $0x2c] sm:$0xf]
    %v1553 = vld [vmem:[%s3 + $0x30] sm:$0xf]
    %v1554 = vld [vmem:[%s3 + $0x34] sm:$0xf]
    %v1555 = vld [vmem:[%s3 + $0x38] sm:$0xf]
    %v1556 = vld [vmem:[%s3 + $0x3c] sm:$0xf]
    %v1557 = vld [vmem:[%s4] sm:$0xf]
    %v1558 = vld [vmem:[%s4 + $0x4] sm:$0xf]
    %v1559 = vld [vmem:[%s4 + $0x8] sm:$0xf]
    %v1560 = vld [vmem:[%s4 + $0xc] sm:$0xf]
    %v1561 = vld [vmem:[%s4 + $0x10] sm:$0xf]
    %v1562 = vld [vmem:[%s4 + $0x14] sm:$0xf]
    %v1563 = vld [vmem:[%s4 + $0x18] sm:$0xf]
    %v1564 = vld [vmem:[%s4 + $0x1c] sm:$0xf]
    %v1581 = vunpack.c.l.b16 %v1541
    %v1582 = vunpack.c.l.b16 %v1542
    %v1583 = vunpack.c.l.b16 %v1543
    %v1584 = vunpack.c.l.b16 %v1544
    %v1585 = vunpack.c.l.b16 %v1545
    %v1586 = vunpack.c.l.b16 %v1546
    %v1587 = vunpack.c.l.b16 %v1547
    %v1588 = vunpack.c.l.b16 %v1548
    %v1589 = vunpack.c.l.b16 %v1549
    %v1590 = vunpack.c.l.b16 %v1550
    %v1591 = vunpack.c.l.b16 %v1551
    %v1592 = vunpack.c.l.b16 %v1552
    %v1593 = vunpack.c.l.b16 %v1553
    %v1594 = vunpack.c.l.b16 %v1554
    %v1595 = vunpack.c.l.b16 %v1555
    %v1596 = vunpack.c.l.b16 %v1556
    %v1597 = vpack.c.b16 %v1582, %v1581
    %v1598 = vpack.c.b16 %v1584, %v1583
    %v1599 = vpack.c.b16 %v1586, %v1585
    %v1600 = vpack.c.b16 %v1588, %v1587
    %v1601 = vpack.c.b16 %v1590, %v1589
    %v1602 = vpack.c.b16 %v1592, %v1591
    %v1603 = vpack.c.b16 %v1594, %v1593
    %v1604 = vpack.c.b16 %v1596, %v1595
    %v1613 = vunpack.c.l.b16 %v1557
    %v1614 = vunpack.c.l.b16 %v1558
    %v1615 = vunpack.c.l.b16 %v1559
    %v1616 = vunpack.c.l.b16 %v1560
    %v1617 = vunpack.c.l.b16 %v1561
    %v1618 = vunpack.c.l.b16 %v1562
    %v1619 = vunpack.c.l.b16 %v1563
    %v1620 = vunpack.c.l.b16 %v1564
    %v1621 = vpack.c.b16 %v1614, %v1613
    %v1622 = vpack.c.b16 %v1616, %v1615
    %v1623 = vpack.c.b16 %v1618, %v1617
    %v1624 = vpack.c.b16 %v1620, %v1619
    %vm1629 = vcmask 523264
    %v1631 = vsel %vm1629, %v1597, 0
    %v1634 = vsel %vm1629, %v1598, 0
    %v1637 = vsel %vm1629, %v1599, 0
    %v1640 = vsel %vm1629, %v1600, 0
    %v1643 = vsel %vm1629, %v1601, 0
    %v1646 = vsel %vm1629, %v1602, 0
    %v1649 = vsel %vm1629, %v1603, 0
    %v1652 = vsel %vm1629, %v1604, 0
    %1654 = vmatprep.subr.bf16.mxu0 0
    %1655 = vmatpush1.bf16.msra.mxu0 0
    %1656 = vmatprep.subr.bf16.mxu0 0
    %1657 = vmatpush1.bf16.msra.mxu0 0
    %1658 = vmatprep.subr.bf16.mxu0 0
    %1659 = vmatpush1.bf16.msra.mxu0 0
    %1660 = vmatprep.subr.bf16.mxu0 0
    %1661 = vmatpush1.bf16.msra.mxu0 0
    %1662 = vmatprep.subr.bf16.mxu0 0
    %1663 = vmatpush1.bf16.msra.mxu0 %v1624
    %1664 = vmatprep.subr.bf16.mxu0 0
    %1665 = vmatpush1.bf16.msra.mxu0 %v1623
    %1666 = vmatprep.subr.bf16.mxu0 0
    %1667 = vmatpush1.bf16.msra.mxu0 %v1622
    %1668 = vmatprep.subr.bf16.mxu0 0
    %1669 = vmatpush1.bf16.msra.mxu0 %v1621
    %1670 = vmatprep.subr.bf16.mxu0 0
    %1671 = vmatpush2.bf16.msra.mxu0 0
    %1672 = vmatprep.subr.bf16.mxu0 0
    %1673 = vmatpush2.bf16.msra.mxu0 0
    %1674 = vmatprep.subr.bf16.mxu0 0
    %1675 = vmatpush2.bf16.msra.mxu0 0
    %1676 = vmatprep.subr.bf16.mxu0 0
    %1677 = vmatpush2.bf16.msra.mxu0 0
    %1678 = vmatprep.subr.bf16.mxu0 0
    %1679 = vmatpush2.bf16.msra.mxu0 0
    %1680 = vmatprep.subr.bf16.mxu0 0
    %1681 = vmatpush2.bf16.msra.mxu0 0
    %1682 = vmatprep.subr.bf16.mxu0 0
    %1683 = vmatpush2.bf16.msra.mxu0 0
    %1684 = vmatprep.subr.bf16.mxu0 0
    %1685 = vmatpush2.bf16.msra.mxu0 0
    %1686 = vmatprep.mubr.bf16.mxu0 0
    %1687 = vmatmul.mubr.bf16.gmra.mxu0 %v1631
    %v1688 = vpop.f32.mrf.mxu0
    %v1689 = vadd.f32 0.0, %v1688
    %v1690 = vpop.f32.mrf.mxu0
    %v1691 = vpop.f32.mrf.mxu0
    %v1692 = vadd.f32 0.0, %v1691
    %v1693 = vpop.f32.mrf.mxu0
    %1694 = vmatprep.mubr.bf16.mxu0 0
    %1695 = vmatmul.mubr.bf16.gmra.mxu0 %v1634
    %v1696 = vpop.f32.mrf.mxu0
    %v1697 = vadd.f32 0.0, %v1696
    %v1698 = vpop.f32.mrf.mxu0
    %v1699 = vpop.f32.mrf.mxu0
    %v1700 = vadd.f32 0.0, %v1699
    %v1701 = vpop.f32.mrf.mxu0
    %1702 = vmatprep.mubr.bf16.mxu0 0
    %1703 = vmatmul.mubr.bf16.gmra.mxu0 %v1637
    %v1704 = vpop.f32.mrf.mxu0
    %v1705 = vadd.f32 0.0, %v1704
    %v1706 = vpop.f32.mrf.mxu0
    %v1707 = vpop.f32.mrf.mxu0
    %v1708 = vadd.f32 0.0, %v1707
    %v1709 = vpop.f32.mrf.mxu0
    %1710 = vmatprep.mubr.bf16.mxu0 0
    %1711 = vmatmul.mubr.bf16.gmra.mxu0 %v1640
    %v1712 = vpop.f32.mrf.mxu0
    %v1713 = vadd.f32 0.0, %v1712
    %v1714 = vpop.f32.mrf.mxu0
    %v1715 = vpop.f32.mrf.mxu0
    %v1716 = vadd.f32 0.0, %v1715
    %v1717 = vpop.f32.mrf.mxu0
    %1718 = vmatprep.mubr.bf16.mxu0 0
    %1719 = vmatmul.mubr.bf16.gmra.mxu0 %v1643
    %v1720 = vpop.f32.mrf.mxu0
    %v1721 = vadd.f32 0.0, %v1720
    %v1722 = vpop.f32.mrf.mxu0
    %v1723 = vpop.f32.mrf.mxu0
    %v1724 = vadd.f32 0.0, %v1723
    %v1725 = vpop.f32.mrf.mxu0
    %1726 = vmatprep.mubr.bf16.mxu0 0
    %1727 = vmatmul.mubr.bf16.gmra.mxu0 %v1646
    %v1728 = vpop.f32.mrf.mxu0
    %v1729 = vadd.f32 0.0, %v1728
    %v1730 = vpop.f32.mrf.mxu0
    %v1731 = vpop.f32.mrf.mxu0
    %v1732 = vadd.f32 0.0, %v1731
    %v1733 = vpop.f32.mrf.mxu0
    %1734 = vmatprep.mubr.bf16.mxu0 0
    %1735 = vmatmul.mubr.bf16.gmra.mxu0 %v1649
    %v1736 = vpop.f32.mrf.mxu0
    %v1737 = vadd.f32 0.0, %v1736
    %v1738 = vpop.f32.mrf.mxu0
    %v1739 = vpop.f32.mrf.mxu0
    %v1740 = vadd.f32 0.0, %v1739
    %v1741 = vpop.f32.mrf.mxu0
    %1742 = vmatprep.mubr.bf16.mxu0 0
    %1743 = vmatmul.mubr.bf16.gmra.mxu0 %v1652
    %v1744 = vpop.f32.mrf.mxu0
    %v1745 = vadd.f32 0.0, %v1744
    %v1746 = vpop.f32.mrf.mxu0
    %v1747 = vpop.f32.mrf.mxu0
    %v1748 = vadd.f32 0.0, %v1747
    %v1749 = vpop.f32.mrf.mxu0
    %1750 = vdwg.mxu0
    %v1751 = vadd.f32 %v1479, %v1689
    %v1752 = vadd.f32 %v1482, %v1692
    %v1753 = vadd.f32 %v1487, %v1697
    %v1754 = vadd.f32 %v1490, %v1700
    %v1755 = vadd.f32 %v1495, %v1705
    %v1756 = vadd.f32 %v1498, %v1708
    %v1757 = vadd.f32 %v1503, %v1713
    %v1758 = vadd.f32 %v1506, %v1716
    %v1759 = vadd.f32 %v1511, %v1721
    %v1760 = vadd.f32 %v1514, %v1724
    %v1761 = vadd.f32 %v1519, %v1729
    %v1762 = vadd.f32 %v1522, %v1732
    %v1763 = vadd.f32 %v1527, %v1737
    %v1764 = vadd.f32 %v1530, %v1740
    %v1765 = vadd.f32 %v1535, %v1745
    %v1766 = vadd.f32 %v1538, %v1748
    %v1767 = vld [vmem:[%s5] sm:$0x1]
    %v1769 = vlaneseq
    %v1770 = vshrl.u32 %v1769, 7
    %v1771 = vsub.s32 0, %v1770
    %v1772 = vrot.slane %v1767, %v1771
    %v1774 = vadd.f32 %v1751, %v1772
    %v1775 = vadd.f32 %v1752, %v1772
    %v1776 = vadd.f32 %v1753, %v1772
    %v1777 = vadd.f32 %v1754, %v1772
    %v1778 = vadd.f32 %v1755, %v1772
    %v1779 = vadd.f32 %v1756, %v1772
    %v1780 = vadd.f32 %v1757, %v1772
    %v1781 = vadd.f32 %v1758, %v1772
    %v1782 = vadd.f32 %v1759, %v1772
    %v1783 = vadd.f32 %v1760, %v1772
    %v1784 = vadd.f32 %v1761, %v1772
    %v1785 = vadd.f32 %v1762, %v1772
    %v1786 = vadd.f32 %v1763, %v1772
    %v1787 = vadd.f32 %v1764, %v1772
    %v1788 = vadd.f32 %v1765, %v1772
    %v1789 = vadd.f32 %v1766, %v1772
    %v1790 = vmax.f32 %v1774, 0.0
    %v1791 = vmax.f32 %v1775, 0.0
    %v1792 = vmax.f32 %v1776, 0.0
    %v1793 = vmax.f32 %v1777, 0.0
    %v1794 = vmax.f32 %v1778, 0.0
    %v1795 = vmax.f32 %v1779, 0.0
    %v1796 = vmax.f32 %v1780, 0.0
    %v1797 = vmax.f32 %v1781, 0.0
    %v1798 = vmax.f32 %v1782, 0.0
    %v1799 = vmax.f32 %v1783, 0.0
    %v1800 = vmax.f32 %v1784, 0.0
    %v1801 = vmax.f32 %v1785, 0.0
    %v1802 = vmax.f32 %v1786, 0.0
    %v1803 = vmax.f32 %v1787, 0.0
    %v1804 = vmax.f32 %v1788, 0.0
    %v1805 = vmax.f32 %v1789, 0.0
    %1806 = vst [vmem:[#allocation2] sm:$0xff] %v1790
    %1807 = vst [vmem:[#allocation2 + $0x8] sm:$0xff] %v1791
    %1808 = vst [vmem:[#allocation2 + $0x10] sm:$0xff] %v1792
    %1809 = vst [vmem:[#allocation2 + $0x18] sm:$0xff] %v1793
    %1810 = vst [vmem:[#allocation2 + $0x20] sm:$0xff] %v1794
    %1811 = vst [vmem:[#allocation2 + $0x28] sm:$0xff] %v1795
    %1812 = vst [vmem:[#allocation2 + $0x30] sm:$0xff] %v1796
    %1813 = vst [vmem:[#allocation2 + $0x38] sm:$0xff] %v1797
    %1814 = vst [vmem:[#allocation2 + $0x40] sm:$0xff] %v1798
    %1815 = vst [vmem:[#allocation2 + $0x48] sm:$0xff] %v1799
    %1816 = vst [vmem:[#allocation2 + $0x50] sm:$0xff] %v1800
    %1817 = vst [vmem:[#allocation2 + $0x58] sm:$0xff] %v1801
    %1818 = vst [vmem:[#allocation2 + $0x60] sm:$0xff] %v1802
    %1819 = vst [vmem:[#allocation2 + $0x68] sm:$0xff] %v1803
    %1820 = vst [vmem:[#allocation2 + $0x70] sm:$0xff] %v1804
    %1821 = vst [vmem:[#allocation2 + $0x78] sm:$0xff] %v1805
    // Predicated region
    $region26: #{resnet_block_forward.3} parent=1 // pred_check
      _
    $region27: #{resnet_block_forward.3} parent=1 // pred_check_branch
      %1823 = sbr.rel (0) target = $region29
    $region28: #{resnet_block_forward.3} parent=1 // pred_region
      %s1825 = ssub.s32 2048, 2048
      %1826 = vsyncadd [#allocation3], %s1825
      %s1827 = sshll.u32 [#allocation2], 4
      %s1828 = int_to_ptr.vmem [resolvable:$true] %s1827
      %1833 = dma.vmem_to_hbm [thread:$0]  %s1828, 2048, %s6, [#allocation3], 128, 128, 8
    $region29: #{resnet_block_forward.3} parent=1 // pred_fallthru
      _
    // Predicated region
    $region30: #{resnet_block_forward.3} parent=1 // pred_check
      _
    $region31: #{resnet_block_forward.3} parent=1 // pred_check_branch
      %1835 = sbr.rel (0) target = $region33
    $region32: #{resnet_block_forward.3} parent=1 // pred_region
      %1836 = dma.done [#allocation3], 2048
    $region33: #{resnet_block_forward.3} parent=1 // pred_fallthru
      _
    %1837 = vsyncpa [#allocation3], 1

</llo_original>
